<compile_context>
chip_gen: v7x
topology: tpu7x:2x2x1
jax: 0.10.0
libtpu: 0.0.40
codegen_flags: <defaults>
</compile_context>

<pallas_src>
import jax
import jax.numpy as jnp
import numpy as np
from jax.experimental import pallas as pl
from jax.experimental.pallas import tpu as pltpu

# ----- hyperparameters mirroring args / data in the PyTorch module -----
B = 2                  # batch
P = 8                  # args.window (sequence length)
M = 16                 # data.m (number of series)
HID = 32               # args.hidRNN
RESIDUAL_WINDOW = 4    # args.residual_window (<= P)
RATIO = 0.5            # args.ratio
# args.dropout -> identity at inference; args.output_fun == 'sigmoid'


def cxx_kernel(x_ref, win_ref, gib_ref, whh_ref, bhn_ref, w1_ref,
               wsel_ref, masked_ref, bcomb_ref, out_ref):
    # x_ref    : (P*B, M)   time-major flattened raw input
    # win_ref  : (M, 3*HID) fused input weights  = (adj*mask) @ W_ih^T
    # gib_ref  : (1, 3*HID) input bias with r/z hidden biases folded in
    # whh_ref  : (HID, 3*HID) W_hh^T (native, unpadded)
    # bhn_ref  : (1, HID)   n-gate hidden bias (must stay inside r*(...))
    # w1_ref   : (HID, M)   linear1 weight^T
    # wsel_ref : (B, P*B)   residual time-selection matrix (carries w_res)
    # masked   : (M, M)     adj * mask (needed only for the residual path)
    # bcomb    : (1, M)     b1 * ratio + b_res (folded output bias)
    PB = x_ref.shape[0]
    Bn = wsel_ref.shape[0]
    Pn = PB // Bn
    H = whh_ref.shape[0]

    x_flat = x_ref[...]

    # ---- hoisted batched input-side matmul (masked adjacency pre-folded) ----
    gi = jnp.dot(x_flat, win_ref[...],
                 preferred_element_type=jnp.float32) + gib_ref[...]     # (P*B, 3H)

    whh = whh_ref[...]
    bhn = bhn_ref[...]

    # ---- serial GRU recurrence: only h @ W_hh per step (H=32, 3H=96 lanes) ----
    h = jnp.zeros((Bn, H), jnp.float32)
    for t in range(Pn):
        gi_t = gi[t * Bn:(t + 1) * Bn, :]                               # static (B, 3H)
        gh = jnp.dot(h, whh, preferred_element_type=jnp.float32)        # (B, 3H)
        r = jax.nn.sigmoid(gi_t[:, 0:H] + gh[:, 0:H])
        z = jax.nn.sigmoid(gi_t[:, H:2 * H] + gh[:, H:2 * H])
        n = jnp.tanh(gi_t[:, 2 * H:3 * H] + r * (gh[:, 2 * H:3 * H] + bhn))
        h = (1.0 - z) * n + z * h

    # dropout -> identity (inference)
    res = jnp.dot(h, w1_ref[...], preferred_element_type=jnp.float32)   # (B, M)
    # residual (autoregressive) term: (wsel @ x_flat) @ masked == wsel @ (x_flat @ masked)
    xr = jnp.dot(wsel_ref[...], x_flat, preferred_element_type=jnp.float32)   # (B, M)
    zres = jnp.dot(xr, masked_ref[...], preferred_element_type=jnp.float32)   # (B, M)
    out_ref[...] = jax.nn.sigmoid(res * RATIO + zres + bcomb_ref[...])  # output_fun == 'sigmoid'


def prepare_params(adj, mask, wih_t, whh_t, bih, bhh, w1_t, b1, wres, bres,
                   batch, window):
    """Parameter-only prep; run ONCE, outside the per-call path."""
    masked = (adj * mask).astype(jnp.float32)                            # (M, M)
    # fuse masked-adjacency into the input weights: x @ masked @ W_ih == x @ (masked @ W_ih)
    w_in_eff = jnp.dot(masked, wih_t)                                    # (M, 3H)
    # fold r/z hidden biases into the input-side bias; keep n-gate hidden bias separate
    gi_bias = jnp.concatenate(
        [bih[:, :2 * HID] + bhh[:, :2 * HID], bih[:, 2 * HID:3 * HID]], axis=1)  # (1, 3H)
    bhn = bhh[:, 2 * HID:3 * HID]                                        # (1, H)
    # residual time-selection matrix: wsel[b, t*B + b] = w_res[t - (P - RW)]
    rw = wres.shape[0]
    eye = jnp.eye(batch, dtype=jnp.float32)
    wres_full = jnp.concatenate([jnp.zeros((window - rw,), jnp.float32), wres])   # (P,)
    wsel = (wres_full[:, None, None] * eye[None, :, :]).reshape(window * batch, batch).T
    # folded output bias
    bcomb = b1 * RATIO + bres[0]                                         # (1, M)
    return (masked, w_in_eff, gi_bias, jnp.asarray(whh_t, jnp.float32),
            bhn, jnp.asarray(w1_t, jnp.float32), wsel, bcomb)


@jax.jit
def model_forward(x_bpm, masked, w_in_eff, gi_bias, whh_t, bhn, w1_t, wsel, bcomb):
    Bn, Pn, Mn = x_bpm.shape
    x_flat = jnp.transpose(x_bpm, (1, 0, 2)).reshape(Pn * Bn, Mn)        # time-major (P*B, M)
    vmem = pl.BlockSpec(memory_space=pltpu.MemorySpace.VMEM)
    return pl.pallas_call(
        cxx_kernel,
        out_shape=jax.ShapeDtypeStruct((Bn, Mn), jnp.float32),
        in_specs=[vmem] * 9,
        out_specs=vmem,
    )(x_flat, w_in_eff, gi_bias, whh_t, bhn, w1_t, wsel, masked, bcomb)


def reference_forward(x_bpm, adj, mask, wih_t, whh_t, bih, bhh, w1_t, b1, wres, bres):
    """Pure-JAX reference mirroring the PyTorch forward."""
    masked = adj * mask
    xm = jnp.einsum('bpm,mn->bpn', x_bpm, masked)                # (B, P, M)
    h = jnp.zeros((x_bpm.shape[0], HID), jnp.float32)
    for t in range(P):
        x_t = xm[:, t, :]
        gi = x_t @ wih_t + bih
        gh = h @ whh_t + bhh
        r = jax.nn.sigmoid(gi[:, :HID] + gh[:, :HID])
        z = jax.nn.sigmoid(gi[:, HID:2 * HID] + gh[:, HID:2 * HID])
        n = jnp.tanh(gi[:, 2 * HID:] + r * gh[:, 2 * HID:])
        h = (1.0 - z) * n + z * h
    res = h @ w1_t + b1
    zt = xm[:, -RESIDUAL_WINDOW:, :]                             # (B, RW, M)
    zt = jnp.transpose(zt, (0, 2, 1)).reshape(-1, RESIDUAL_WINDOW)
    zv = (zt @ wres[:, None] + bres[0]).reshape(-1, M)
    res = res * RATIO + zv
    return jax.nn.sigmoid(res)


if __name__ == "__main__":
    key = jax.random.PRNGKey(0)
    keys = jax.random.split(key, 12)

    x = jax.random.normal(keys[0], (B, P, M), jnp.float32)
    adj = jax.random.normal(keys[1], (M, M), jnp.float32)
    mask = jax.random.normal(keys[2], (M, M), jnp.float32) * np.sqrt(2.0 / M)

    # GRU parameters (PyTorch layout weight_ih:(3H,M), weight_hh:(3H,H)) stored transposed.
    wih_t = jax.random.normal(keys[3], (M, 3 * HID), jnp.float32) * 0.1
    whh_t = jax.random.normal(keys[4], (HID, 3 * HID), jnp.float32) * 0.1
    bih = jax.random.normal(keys[5], (1, 3 * HID), jnp.float32) * 0.1
    bhh = jax.random.normal(keys[6], (1, 3 * HID), jnp.float32) * 0.1

    # linear1: hidR -> m  (weight stored transposed: (H, M))
    w1_t = jax.random.normal(keys[7], (HID, M), jnp.float32) * 0.1
    b1 = jax.random.normal(keys[8], (1, M), jnp.float32) * 0.1

    # residual: residual_window -> 1
    wres = jax.random.normal(keys[9], (RESIDUAL_WINDOW,), jnp.float32) * 0.1
    bres = jax.random.normal(keys[10], (1,), jnp.float32) * 0.1

    # one-time parameter prep (hoisted off the per-call path)
    params = prepare_params(adj, mask, wih_t, whh_t, bih, bhh, w1_t, b1,
                            wres, bres, B, P)
    params = jax.tree_util.tree_map(jax.block_until_ready, params)

    out = model_forward(x, *params)
    out = jax.block_until_ready(out)

    ref = reference_forward(x, adj, mask, wih_t, whh_t, bih, bhh, w1_t, b1, wres, bres)
    assert out.shape == (B, M), out.shape
    np.testing.assert_allclose(np.asarray(out), np.asarray(ref), rtol=1e-3, atol=1e-3)

    print("KERNEL_OK")
</pallas_src>

<mosaic_0001>
module attributes {stable_mosaic.version = 11 : i64} {
  func.func @cxx_kernel(%arg0: memref<16x16xf32, #tpu.memory_space<vmem>>, %arg1: memref<16x96xf32, #tpu.memory_space<vmem>>, %arg2: memref<1x96xf32, #tpu.memory_space<vmem>>, %arg3: memref<32x96xf32, #tpu.memory_space<vmem>>, %arg4: memref<1x32xf32, #tpu.memory_space<vmem>>, %arg5: memref<32x16xf32, #tpu.memory_space<vmem>>, %arg6: memref<2x16xf32, #tpu.memory_space<vmem>>, %arg7: memref<16x16xf32, #tpu.memory_space<vmem>>, %arg8: memref<1x16xf32, #tpu.memory_space<vmem>>, %arg9: memref<2x16xf32, #tpu.memory_space<vmem>>) attributes {dimension_semantics = [], scalar_prefetch = 0 : i64, scratch_operands = 0 : i64, tpu.core_type = #tpu.core_type<tc>} {
    %c0 = arith.constant 0 : index
    %c0_0 = arith.constant 0 : index
    %0 = vector.load %arg0[%c0, %c0_0] : memref<16x16xf32, #tpu.memory_space<vmem>>, vector<16x16xf32>
    %c0_1 = arith.constant 0 : index
    %c0_2 = arith.constant 0 : index
    %1 = vector.load %arg1[%c0_1, %c0_2] : memref<16x96xf32, #tpu.memory_space<vmem>>, vector<16x96xf32>
    %cst = arith.constant dense<0.000000e+00> : vector<16x96xf32>
    %2 = tpu.matmul %0, %1, %cst {dimension_numbers = #tpu.dot_dimension_numbers<[1], [0], [0], [1], [0, 0, 1, 1], [], []>} : vector<16x16xf32>, vector<16x96xf32>, vector<16x96xf32> -> vector<16x96xf32>
    %c0_3 = arith.constant 0 : index
    %c0_4 = arith.constant 0 : index
    %3 = vector.load %arg2[%c0_3, %c0_4] : memref<1x96xf32, #tpu.memory_space<vmem>>, vector<1x96xf32>
    %4 = vector.broadcast %3 : vector<1x96xf32> to vector<16x96xf32>
    %5 = arith.addf %2, %4 : vector<16x96xf32>
    %c0_5 = arith.constant 0 : index
    %c0_6 = arith.constant 0 : index
    %6 = vector.load %arg3[%c0_5, %c0_6] : memref<32x96xf32, #tpu.memory_space<vmem>>, vector<32x96xf32>
    %c0_7 = arith.constant 0 : index
    %c0_8 = arith.constant 0 : index
    %7 = vector.load %arg4[%c0_7, %c0_8] : memref<1x32xf32, #tpu.memory_space<vmem>>, vector<1x32xf32>
    %cst_9 = arith.constant 0.000000e+00 : f32
    %8 = vector.broadcast %cst_9 : f32 to vector<2x32xf32>
    %9 = vector.extract_strided_slice %5 {offsets = [0, 0], sizes = [2, 96], strides = [1, 1]} : vector<16x96xf32> to vector<2x96xf32>
    %cst_10 = arith.constant dense<0.000000e+00> : vector<2x96xf32>
    %10 = tpu.matmul %8, %6, %cst_10 {dimension_numbers = #tpu.dot_dimension_numbers<[1], [0], [0], [1], [0, 0, 1, 1], [], []>} : vector<2x32xf32>, vector<32x96xf32>, vector<2x96xf32> -> vector<2x96xf32>
    %11 = vector.extract_strided_slice %9 {offsets = [0, 0], sizes = [2, 32], strides = [1, 1]} : vector<2x96xf32> to vector<2x32xf32>
    %12 = vector.extract_strided_slice %10 {offsets = [0, 0], sizes = [2, 32], strides = [1, 1]} : vector<2x96xf32> to vector<2x32xf32>
    %13 = arith.addf %11, %12 : vector<2x32xf32>
    %14 = arith.negf %13 : vector<2x32xf32>
    %15 = math.exp %14 : vector<2x32xf32>
    %cst_11 = arith.constant 1.000000e+00 : f32
    %16 = vector.broadcast %cst_11 : f32 to vector<2x32xf32>
    %17 = arith.addf %16, %15 : vector<2x32xf32>
    %18 = arith.divf %16, %17 : vector<2x32xf32>
    %19 = vector.extract_strided_slice %9 {offsets = [0, 32], sizes = [2, 32], strides = [1, 1]} : vector<2x96xf32> to vector<2x32xf32>
    %20 = vector.extract_strided_slice %10 {offsets = [0, 32], sizes = [2, 32], strides = [1, 1]} : vector<2x96xf32> to vector<2x32xf32>
    %21 = arith.addf %19, %20 : vector<2x32xf32>
    %22 = arith.negf %21 : vector<2x32xf32>
    %23 = math.exp %22 : vector<2x32xf32>
    %cst_12 = arith.constant 1.000000e+00 : f32
    %24 = vector.broadcast %cst_12 : f32 to vector<2x32xf32>
    %25 = arith.addf %24, %23 : vector<2x32xf32>
    %26 = arith.divf %24, %25 : vector<2x32xf32>
    %27 = vector.extract_strided_slice %9 {offsets = [0, 64], sizes = [2, 32], strides = [1, 1]} : vector<2x96xf32> to vector<2x32xf32>
    %28 = vector.extract_strided_slice %10 {offsets = [0, 64], sizes = [2, 32], strides = [1, 1]} : vector<2x96xf32> to vector<2x32xf32>
    %29 = vector.broadcast %7 : vector<1x32xf32> to vector<2x32xf32>
    %30 = arith.addf %28, %29 : vector<2x32xf32>
    %31 = arith.mulf %18, %30 : vector<2x32xf32>
    %32 = arith.addf %27, %31 : vector<2x32xf32>
    %33 = math.tanh %32 : vector<2x32xf32>
    %cst_13 = arith.constant 1.000000e+00 : f32
    %34 = vector.broadcast %cst_13 : f32 to vector<2x32xf32>
    %35 = arith.subf %34, %26 : vector<2x32xf32>
    %36 = arith.mulf %35, %33 : vector<2x32xf32>
    %37 = arith.mulf %26, %8 : vector<2x32xf32>
    %38 = arith.addf %36, %37 : vector<2x32xf32>
    %39 = vector.extract_strided_slice %5 {offsets = [2, 0], sizes = [2, 96], strides = [1, 1]} : vector<16x96xf32> to vector<2x96xf32>
    %cst_14 = arith.constant dense<0.000000e+00> : vector<2x96xf32>
    %40 = tpu.matmul %38, %6, %cst_14 {dimension_numbers = #tpu.dot_dimension_numbers<[1], [0], [0], [1], [0, 0, 1, 1], [], []>} : vector<2x32xf32>, vector<32x96xf32>, vector<2x96xf32> -> vector<2x96xf32>
    %41 = vector.extract_strided_slice %39 {offsets = [0, 0], sizes = [2, 32], strides = [1, 1]} : vector<2x96xf32> to vector<2x32xf32>
    %42 = vector.extract_strided_slice %40 {offsets = [0, 0], sizes = [2, 32], strides = [1, 1]} : vector<2x96xf32> to vector<2x32xf32>
    %43 = arith.addf %41, %42 : vector<2x32xf32>
    %44 = arith.negf %43 : vector<2x32xf32>
    %45 = math.exp %44 : vector<2x32xf32>
    %cst_15 = arith.constant 1.000000e+00 : f32
    %46 = vector.broadcast %cst_15 : f32 to vector<2x32xf32>
    %47 = arith.addf %46, %45 : vector<2x32xf32>
    %48 = arith.divf %46, %47 : vector<2x32xf32>
    %49 = vector.extract_strided_slice %39 {offsets = [0, 32], sizes = [2, 32], strides = [1, 1]} : vector<2x96xf32> to vector<2x32xf32>
    %50 = vector.extract_strided_slice %40 {offsets = [0, 32], sizes = [2, 32], strides = [1, 1]} : vector<2x96xf32> to vector<2x32xf32>
    %51 = arith.addf %49, %50 : vector<2x32xf32>
    %52 = arith.negf %51 : vector<2x32xf32>
    %53 = math.exp %52 : vector<2x32xf32>
    %cst_16 = arith.constant 1.000000e+00 : f32
    %54 = vector.broadcast %cst_16 : f32 to vector<2x32xf32>
    %55 = arith.addf %54, %53 : vector<2x32xf32>
    %56 = arith.divf %54, %55 : vector<2x32xf32>
    %57 = vector.extract_strided_slice %39 {offsets = [0, 64], sizes = [2, 32], strides = [1, 1]} : vector<2x96xf32> to vector<2x32xf32>
    %58 = vector.extract_strided_slice %40 {offsets = [0, 64], sizes = [2, 32], strides = [1, 1]} : vector<2x96xf32> to vector<2x32xf32>
    %59 = vector.broadcast %7 : vector<1x32xf32> to vector<2x32xf32>
    %60 = arith.addf %58, %59 : vector<2x32xf32>
    %61 = arith.mulf %48, %60 : vector<2x32xf32>
    %62 = arith.addf %57, %61 : vector<2x32xf32>
    %63 = math.tanh %62 : vector<2x32xf32>
    %cst_17 = arith.constant 1.000000e+00 : f32
    %64 = vector.broadcast %cst_17 : f32 to vector<2x32xf32>
    %65 = arith.subf %64, %56 : vector<2x32xf32>
    %66 = arith.mulf %65, %63 : vector<2x32xf32>
    %67 = arith.mulf %56, %38 : vector<2x32xf32>
    %68 = arith.addf %66, %67 : vector<2x32xf32>
    %69 = vector.extract_strided_slice %5 {offsets = [4, 0], sizes = [2, 96], strides = [1, 1]} : vector<16x96xf32> to vector<2x96xf32>
    %cst_18 = arith.constant dense<0.000000e+00> : vector<2x96xf32>
    %70 = tpu.matmul %68, %6, %cst_18 {dimension_numbers = #tpu.dot_dimension_numbers<[1], [0], [0], [1], [0, 0, 1, 1], [], []>} : vector<2x32xf32>, vector<32x96xf32>, vector<2x96xf32> -> vector<2x96xf32>
    %71 = vector.extract_strided_slice %69 {offsets = [0, 0], sizes = [2, 32], strides = [1, 1]} : vector<2x96xf32> to vector<2x32xf32>
    %72 = vector.extract_strided_slice %70 {offsets = [0, 0], sizes = [2, 32], strides = [1, 1]} : vector<2x96xf32> to vector<2x32xf32>
    %73 = arith.addf %71, %72 : vector<2x32xf32>
    %74 = arith.negf %73 : vector<2x32xf32>
    %75 = math.exp %74 : vector<2x32xf32>
    %cst_19 = arith.constant 1.000000e+00 : f32
    %76 = vector.broadcast %cst_19 : f32 to vector<2x32xf32>
    %77 = arith.addf %76, %75 : vector<2x32xf32>
    %78 = arith.divf %76, %77 : vector<2x32xf32>
    %79 = vector.extract_strided_slice %69 {offsets = [0, 32], sizes = [2, 32], strides = [1, 1]} : vector<2x96xf32> to vector<2x32xf32>
    %80 = vector.extract_strided_slice %70 {offsets = [0, 32], sizes = [2, 32], strides = [1, 1]} : vector<2x96xf32> to vector<2x32xf32>
    %81 = arith.addf %79, %80 : vector<2x32xf32>
    %82 = arith.negf %81 : vector<2x32xf32>
    %83 = math.exp %82 : vector<2x32xf32>
    %cst_20 = arith.constant 1.000000e+00 : f32
    %84 = vector.broadcast %cst_20 : f32 to vector<2x32xf32>
    %85 = arith.addf %84, %83 : vector<2x32xf32>
    %86 = arith.divf %84, %85 : vector<2x32xf32>
    %87 = vector.extract_strided_slice %69 {offsets = [0, 64], sizes = [2, 32], strides = [1, 1]} : vector<2x96xf32> to vector<2x32xf32>
    %88 = vector.extract_strided_slice %70 {offsets = [0, 64], sizes = [2, 32], strides = [1, 1]} : vector<2x96xf32> to vector<2x32xf32>
    %89 = vector.broadcast %7 : vector<1x32xf32> to vector<2x32xf32>
    %90 = arith.addf %88, %89 : vector<2x32xf32>
    %91 = arith.mulf %78, %90 : vector<2x32xf32>
    %92 = arith.addf %87, %91 : vector<2x32xf32>
    %93 = math.tanh %92 : vector<2x32xf32>
    %cst_21 = arith.constant 1.000000e+00 : f32
    %94 = vector.broadcast %cst_21 : f32 to vector<2x32xf32>
    %95 = arith.subf %94, %86 : vector<2x32xf32>
    %96 = arith.mulf %95, %93 : vector<2x32xf32>
    %97 = arith.mulf %86, %68 : vector<2x32xf32>
    %98 = arith.addf %96, %97 : vector<2x32xf32>
    %99 = vector.extract_strided_slice %5 {offsets = [6, 0], sizes = [2, 96], strides = [1, 1]} : vector<16x96xf32> to vector<2x96xf32>
    %cst_22 = arith.constant dense<0.000000e+00> : vector<2x96xf32>
    %100 = tpu.matmul %98, %6, %cst_22 {dimension_numbers = #tpu.dot_dimension_numbers<[1], [0], [0], [1], [0, 0, 1, 1], [], []>} : vector<2x32xf32>, vector<32x96xf32>, vector<2x96xf32> -> vector<2x96xf32>
    %101 = vector.extract_strided_slice %99 {offsets = [0, 0], sizes = [2, 32], strides = [1, 1]} : vector<2x96xf32> to vector<2x32xf32>
    %102 = vector.extract_strided_slice %100 {offsets = [0, 0], sizes = [2, 32], strides = [1, 1]} : vector<2x96xf32> to vector<2x32xf32>
    %103 = arith.addf %101, %102 : vector<2x32xf32>
    %104 = arith.negf %103 : vector<2x32xf32>
    %105 = math.exp %104 : vector<2x32xf32>
    %cst_23 = arith.constant 1.000000e+00 : f32
    %106 = vector.broadcast %cst_23 : f32 to vector<2x32xf32>
    %107 = arith.addf %106, %105 : vector<2x32xf32>
    %108 = arith.divf %106, %107 : vector<2x32xf32>
    %109 = vector.extract_strided_slice %99 {offsets = [0, 32], sizes = [2, 32], strides = [1, 1]} : vector<2x96xf32> to vector<2x32xf32>
    %110 = vector.extract_strided_slice %100 {offsets = [0, 32], sizes = [2, 32], strides = [1, 1]} : vector<2x96xf32> to vector<2x32xf32>
    %111 = arith.addf %109, %110 : vector<2x32xf32>
    %112 = arith.negf %111 : vector<2x32xf32>
    %113 = math.exp %112 : vector<2x32xf32>
    %cst_24 = arith.constant 1.000000e+00 : f32
    %114 = vector.broadcast %cst_24 : f32 to vector<2x32xf32>
    %115 = arith.addf %114, %113 : vector<2x32xf32>
    %116 = arith.divf %114, %115 : vector<2x32xf32>
    %117 = vector.extract_strided_slice %99 {offsets = [0, 64], sizes = [2, 32], strides = [1, 1]} : vector<2x96xf32> to vector<2x32xf32>
    %118 = vector.extract_strided_slice %100 {offsets = [0, 64], sizes = [2, 32], strides = [1, 1]} : vector<2x96xf32> to vector<2x32xf32>
    %119 = vector.broadcast %7 : vector<1x32xf32> to vector<2x32xf32>
    %120 = arith.addf %118, %119 : vector<2x32xf32>
    %121 = arith.mulf %108, %120 : vector<2x32xf32>
    %122 = arith.addf %117, %121 : vector<2x32xf32>
    %123 = math.tanh %122 : vector<2x32xf32>
    %cst_25 = arith.constant 1.000000e+00 : f32
    %124 = vector.broadcast %cst_25 : f32 to vector<2x32xf32>
    %125 = arith.subf %124, %116 : vector<2x32xf32>
    %126 = arith.mulf %125, %123 : vector<2x32xf32>
    %127 = arith.mulf %116, %98 : vector<2x32xf32>
    %128 = arith.addf %126, %127 : vector<2x32xf32>
    %129 = vector.extract_strided_slice %5 {offsets = [8, 0], sizes = [2, 96], strides = [1, 1]} : vector<16x96xf32> to vector<2x96xf32>
    %cst_26 = arith.constant dense<0.000000e+00> : vector<2x96xf32>
    %130 = tpu.matmul %128, %6, %cst_26 {dimension_numbers = #tpu.dot_dimension_numbers<[1], [0], [0], [1], [0, 0, 1, 1], [], []>} : vector<2x32xf32>, vector<32x96xf32>, vector<2x96xf32> -> vector<2x96xf32>
    %131 = vector.extract_strided_slice %129 {offsets = [0, 0], sizes = [2, 32], strides = [1, 1]} : vector<2x96xf32> to vector<2x32xf32>
    %132 = vector.extract_strided_slice %130 {offsets = [0, 0], sizes = [2, 32], strides = [1, 1]} : vector<2x96xf32> to vector<2x32xf32>
    %133 = arith.addf %131, %132 : vector<2x32xf32>
    %134 = arith.negf %133 : vector<2x32xf32>
    %135 = math.exp %134 : vector<2x32xf32>
    %cst_27 = arith.constant 1.000000e+00 : f32
    %136 = vector.broadcast %cst_27 : f32 to vector<2x32xf32>
    %137 = arith.addf %136, %135 : vector<2x32xf32>
    %138 = arith.divf %136, %137 : vector<2x32xf32>
    %139 = vector.extract_strided_slice %129 {offsets = [0, 32], sizes = [2, 32], strides = [1, 1]} : vector<2x96xf32> to vector<2x32xf32>
    %140 = vector.extract_strided_slice %130 {offsets = [0, 32], sizes = [2, 32], strides = [1, 1]} : vector<2x96xf32> to vector<2x32xf32>
    %141 = arith.addf %139, %140 : vector<2x32xf32>
    %142 = arith.negf %141 : vector<2x32xf32>
    %143 = math.exp %142 : vector<2x32xf32>
    %cst_28 = arith.constant 1.000000e+00 : f32
    %144 = vector.broadcast %cst_28 : f32 to vector<2x32xf32>
    %145 = arith.addf %144, %143 : vector<2x32xf32>
    %146 = arith.divf %144, %145 : vector<2x32xf32>
    %147 = vector.extract_strided_slice %129 {offsets = [0, 64], sizes = [2, 32], strides = [1, 1]} : vector<2x96xf32> to vector<2x32xf32>
    %148 = vector.extract_strided_slice %130 {offsets = [0, 64], sizes = [2, 32], strides = [1, 1]} : vector<2x96xf32> to vector<2x32xf32>
    %149 = vector.broadcast %7 : vector<1x32xf32> to vector<2x32xf32>
    %150 = arith.addf %148, %149 : vector<2x32xf32>
    %151 = arith.mulf %138, %150 : vector<2x32xf32>
    %152 = arith.addf %147, %151 : vector<2x32xf32>
    %153 = math.tanh %152 : vector<2x32xf32>
    %cst_29 = arith.constant 1.000000e+00 : f32
    %154 = vector.broadcast %cst_29 : f32 to vector<2x32xf32>
    %155 = arith.subf %154, %146 : vector<2x32xf32>
    %156 = arith.mulf %155, %153 : vector<2x32xf32>
    %157 = arith.mulf %146, %128 : vector<2x32xf32>
    %158 = arith.addf %156, %157 : vector<2x32xf32>
    %159 = vector.extract_strided_slice %5 {offsets = [10, 0], sizes = [2, 96], strides = [1, 1]} : vector<16x96xf32> to vector<2x96xf32>
    %cst_30 = arith.constant dense<0.000000e+00> : vector<2x96xf32>
    %160 = tpu.matmul %158, %6, %cst_30 {dimension_numbers = #tpu.dot_dimension_numbers<[1], [0], [0], [1], [0, 0, 1, 1], [], []>} : vector<2x32xf32>, vector<32x96xf32>, vector<2x96xf32> -> vector<2x96xf32>
    %161 = vector.extract_strided_slice %159 {offsets = [0, 0], sizes = [2, 32], strides = [1, 1]} : vector<2x96xf32> to vector<2x32xf32>
    %162 = vector.extract_strided_slice %160 {offsets = [0, 0], sizes = [2, 32], strides = [1, 1]} : vector<2x96xf32> to vector<2x32xf32>
    %163 = arith.addf %161, %162 : vector<2x32xf32>
    %164 = arith.negf %163 : vector<2x32xf32>
    %165 = math.exp %164 : vector<2x32xf32>
    %cst_31 = arith.constant 1.000000e+00 : f32
    %166 = vector.broadcast %cst_31 : f32 to vector<2x32xf32>
    %167 = arith.addf %166, %165 : vector<2x32xf32>
    %168 = arith.divf %166, %167 : vector<2x32xf32>
    %169 = vector.extract_strided_slice %159 {offsets = [0, 32], sizes = [2, 32], strides = [1, 1]} : vector<2x96xf32> to vector<2x32xf32>
    %170 = vector.extract_strided_slice %160 {offsets = [0, 32], sizes = [2, 32], strides = [1, 1]} : vector<2x96xf32> to vector<2x32xf32>
    %171 = arith.addf %169, %170 : vector<2x32xf32>
    %172 = arith.negf %171 : vector<2x32xf32>
    %173 = math.exp %172 : vector<2x32xf32>
    %cst_32 = arith.constant 1.000000e+00 : f32
    %174 = vector.broadcast %cst_32 : f32 to vector<2x32xf32>
    %175 = arith.addf %174, %173 : vector<2x32xf32>
    %176 = arith.divf %174, %175 : vector<2x32xf32>
    %177 = vector.extract_strided_slice %159 {offsets = [0, 64], sizes = [2, 32], strides = [1, 1]} : vector<2x96xf32> to vector<2x32xf32>
    %178 = vector.extract_strided_slice %160 {offsets = [0, 64], sizes = [2, 32], strides = [1, 1]} : vector<2x96xf32> to vector<2x32xf32>
    %179 = vector.broadcast %7 : vector<1x32xf32> to vector<2x32xf32>
    %180 = arith.addf %178, %179 : vector<2x32xf32>
    %181 = arith.mulf %168, %180 : vector<2x32xf32>
    %182 = arith.addf %177, %181 : vector<2x32xf32>
    %183 = math.tanh %182 : vector<2x32xf32>
    %cst_33 = arith.constant 1.000000e+00 : f32
    %184 = vector.broadcast %cst_33 : f32 to vector<2x32xf32>
    %185 = arith.subf %184, %176 : vector<2x32xf32>
    %186 = arith.mulf %185, %183 : vector<2x32xf32>
    %187 = arith.mulf %176, %158 : vector<2x32xf32>
    %188 = arith.addf %186, %187 : vector<2x32xf32>
    %189 = vector.extract_strided_slice %5 {offsets = [12, 0], sizes = [2, 96], strides = [1, 1]} : vector<16x96xf32> to vector<2x96xf32>
    %cst_34 = arith.constant dense<0.000000e+00> : vector<2x96xf32>
    %190 = tpu.matmul %188, %6, %cst_34 {dimension_numbers = #tpu.dot_dimension_numbers<[1], [0], [0], [1], [0, 0, 1, 1], [], []>} : vector<2x32xf32>, vector<32x96xf32>, vector<2x96xf32> -> vector<2x96xf32>
    %191 = vector.extract_strided_slice %189 {offsets = [0, 0], sizes = [2, 32], strides = [1, 1]} : vector<2x96xf32> to vector<2x32xf32>
    %192 = vector.extract_strided_slice %190 {offsets = [0, 0], sizes = [2, 32], strides = [1, 1]} : vector<2x96xf32> to vector<2x32xf32>
    %193 = arith.addf %191, %192 : vector<2x32xf32>
    %194 = arith.negf %193 : vector<2x32xf32>
    %195 = math.exp %194 : vector<2x32xf32>
    %cst_35 = arith.constant 1.000000e+00 : f32
    %196 = vector.broadcast %cst_35 : f32 to vector<2x32xf32>
    %197 = arith.addf %196, %195 : vector<2x32xf32>
    %198 = arith.divf %196, %197 : vector<2x32xf32>
    %199 = vector.extract_strided_slice %189 {offsets = [0, 32], sizes = [2, 32], strides = [1, 1]} : vector<2x96xf32> to vector<2x32xf32>
    %200 = vector.extract_strided_slice %190 {offsets = [0, 32], sizes = [2, 32], strides = [1, 1]} : vector<2x96xf32> to vector<2x32xf32>
    %201 = arith.addf %199, %200 : vector<2x32xf32>
    %202 = arith.negf %201 : vector<2x32xf32>
    %203 = math.exp %202 : vector<2x32xf32>
    %cst_36 = arith.constant 1.000000e+00 : f32
    %204 = vector.broadcast %cst_36 : f32 to vector<2x32xf32>
    %205 = arith.addf %204, %203 : vector<2x32xf32>
    %206 = arith.divf %204, %205 : vector<2x32xf32>
    %207 = vector.extract_strided_slice %189 {offsets = [0, 64], sizes = [2, 32], strides = [1, 1]} : vector<2x96xf32> to vector<2x32xf32>
    %208 = vector.extract_strided_slice %190 {offsets = [0, 64], sizes = [2, 32], strides = [1, 1]} : vector<2x96xf32> to vector<2x32xf32>
    %209 = vector.broadcast %7 : vector<1x32xf32> to vector<2x32xf32>
    %210 = arith.addf %208, %209 : vector<2x32xf32>
    %211 = arith.mulf %198, %210 : vector<2x32xf32>
    %212 = arith.addf %207, %211 : vector<2x32xf32>
    %213 = math.tanh %212 : vector<2x32xf32>
    %cst_37 = arith.constant 1.000000e+00 : f32
    %214 = vector.broadcast %cst_37 : f32 to vector<2x32xf32>
    %215 = arith.subf %214, %206 : vector<2x32xf32>
    %216 = arith.mulf %215, %213 : vector<2x32xf32>
    %217 = arith.mulf %206, %188 : vector<2x32xf32>
    %218 = arith.addf %216, %217 : vector<2x32xf32>
    %219 = vector.extract_strided_slice %5 {offsets = [14, 0], sizes = [2, 96], strides = [1, 1]} : vector<16x96xf32> to vector<2x96xf32>
    %cst_38 = arith.constant dense<0.000000e+00> : vector<2x96xf32>
    %220 = tpu.matmul %218, %6, %cst_38 {dimension_numbers = #tpu.dot_dimension_numbers<[1], [0], [0], [1], [0, 0, 1, 1], [], []>} : vector<2x32xf32>, vector<32x96xf32>, vector<2x96xf32> -> vector<2x96xf32>
    %221 = vector.extract_strided_slice %219 {offsets = [0, 0], sizes = [2, 32], strides = [1, 1]} : vector<2x96xf32> to vector<2x32xf32>
    %222 = vector.extract_strided_slice %220 {offsets = [0, 0], sizes = [2, 32], strides = [1, 1]} : vector<2x96xf32> to vector<2x32xf32>
    %223 = arith.addf %221, %222 : vector<2x32xf32>
    %224 = arith.negf %223 : vector<2x32xf32>
    %225 = math.exp %224 : vector<2x32xf32>
    %cst_39 = arith.constant 1.000000e+00 : f32
    %226 = vector.broadcast %cst_39 : f32 to vector<2x32xf32>
    %227 = arith.addf %226, %225 : vector<2x32xf32>
    %228 = arith.divf %226, %227 : vector<2x32xf32>
    %229 = vector.extract_strided_slice %219 {offsets = [0, 32], sizes = [2, 32], strides = [1, 1]} : vector<2x96xf32> to vector<2x32xf32>
    %230 = vector.extract_strided_slice %220 {offsets = [0, 32], sizes = [2, 32], strides = [1, 1]} : vector<2x96xf32> to vector<2x32xf32>
    %231 = arith.addf %229, %230 : vector<2x32xf32>
    %232 = arith.negf %231 : vector<2x32xf32>
    %233 = math.exp %232 : vector<2x32xf32>
    %cst_40 = arith.constant 1.000000e+00 : f32
    %234 = vector.broadcast %cst_40 : f32 to vector<2x32xf32>
    %235 = arith.addf %234, %233 : vector<2x32xf32>
    %236 = arith.divf %234, %235 : vector<2x32xf32>
    %237 = vector.extract_strided_slice %219 {offsets = [0, 64], sizes = [2, 32], strides = [1, 1]} : vector<2x96xf32> to vector<2x32xf32>
    %238 = vector.extract_strided_slice %220 {offsets = [0, 64], sizes = [2, 32], strides = [1, 1]} : vector<2x96xf32> to vector<2x32xf32>
    %239 = vector.broadcast %7 : vector<1x32xf32> to vector<2x32xf32>
    %240 = arith.addf %238, %239 : vector<2x32xf32>
    %241 = arith.mulf %228, %240 : vector<2x32xf32>
    %242 = arith.addf %237, %241 : vector<2x32xf32>
    %243 = math.tanh %242 : vector<2x32xf32>
    %cst_41 = arith.constant 1.000000e+00 : f32
    %244 = vector.broadcast %cst_41 : f32 to vector<2x32xf32>
    %245 = arith.subf %244, %236 : vector<2x32xf32>
    %246 = arith.mulf %245, %243 : vector<2x32xf32>
    %247 = arith.mulf %236, %218 : vector<2x32xf32>
    %248 = arith.addf %246, %247 : vector<2x32xf32>
    %c0_42 = arith.constant 0 : index
    %c0_43 = arith.constant 0 : index
    %249 = vector.load %arg5[%c0_42, %c0_43] : memref<32x16xf32, #tpu.memory_space<vmem>>, vector<32x16xf32>
    %cst_44 = arith.constant dense<0.000000e+00> : vector<2x16xf32>
    %250 = tpu.matmul %248, %249, %cst_44 {dimension_numbers = #tpu.dot_dimension_numbers<[1], [0], [0], [1], [0, 0, 1, 1], [], []>} : vector<2x32xf32>, vector<32x16xf32>, vector<2x16xf32> -> vector<2x16xf32>
    %c0_45 = arith.constant 0 : index
    %c0_46 = arith.constant 0 : index
    %251 = vector.load %arg6[%c0_45, %c0_46] : memref<2x16xf32, #tpu.memory_space<vmem>>, vector<2x16xf32>
    %cst_47 = arith.constant dense<0.000000e+00> : vector<2x16xf32>
    %252 = tpu.matmul %251, %0, %cst_47 {dimension_numbers = #tpu.dot_dimension_numbers<[1], [0], [0], [1], [0, 0, 1, 1], [], []>} : vector<2x16xf32>, vector<16x16xf32>, vector<2x16xf32> -> vector<2x16xf32>
    %c0_48 = arith.constant 0 : index
    %c0_49 = arith.constant 0 : index
    %253 = vector.load %arg7[%c0_48, %c0_49] : memref<16x16xf32, #tpu.memory_space<vmem>>, vector<16x16xf32>
    %cst_50 = arith.constant dense<0.000000e+00> : vector<2x16xf32>
    %254 = tpu.matmul %252, %253, %cst_50 {dimension_numbers = #tpu.dot_dimension_numbers<[1], [0], [0], [1], [0, 0, 1, 1], [], []>} : vector<2x16xf32>, vector<16x16xf32>, vector<2x16xf32> -> vector<2x16xf32>
    %cst_51 = arith.constant 5.000000e-01 : f32
    %255 = vector.broadcast %cst_51 : f32 to vector<2x16xf32>
    %256 = arith.mulf %250, %255 : vector<2x16xf32>
    %257 = arith.addf %256, %254 : vector<2x16xf32>
    %c0_52 = arith.constant 0 : index
    %c0_53 = arith.constant 0 : index
    %258 = vector.load %arg8[%c0_52, %c0_53] : memref<1x16xf32, #tpu.memory_space<vmem>>, vector<1x16xf32>
    %259 = vector.broadcast %258 : vector<1x16xf32> to vector<2x16xf32>
    %260 = arith.addf %257, %259 : vector<2x16xf32>
    %261 = arith.negf %260 : vector<2x16xf32>
    %262 = math.exp %261 : vector<2x16xf32>
    %cst_54 = arith.constant 1.000000e+00 : f32
    %263 = vector.broadcast %cst_54 : f32 to vector<2x16xf32>
    %264 = arith.addf %263, %262 : vector<2x16xf32>
    %265 = arith.divf %263, %264 : vector<2x16xf32>
    %c0_55 = arith.constant 0 : index
    %c0_56 = arith.constant 0 : index
    %266 = vector.load %arg9[%c0_55, %c0_56] : memref<2x16xf32, #tpu.memory_space<vmem>>, vector<2x16xf32>
    tpu.vector_store %arg9[%c0_55, %c0_56], %265 {strides = array<i32>} : memref<2x16xf32, #tpu.memory_space<vmem>>, vector<2x16xf32>,
    return
  }
}

</mosaic_0001>

<llo_original>
// kernel: model_forward.1
$region0: #{model_forward.1}
  #allocation0 [shape = 'u32[]', space=smem, size = 0x4, offset = 0x4, fixed_abs, tag = 'smem constant byte address 0x4 - core index']
  #allocation1 [shape = 'u32[144,128]{1,0:T(1,128)}', space=vmem, size = 0x12000, scoped, tag = 'internal scratch']
  %s0 = inlined_call_operand.vmem [shape: f32[16,16], index: 0, kind: input, shape index: {}]
  %s1 = inlined_call_operand.vmem [shape: f32[16,96], index: 1, kind: input, shape index: {}]
  %s2 = inlined_call_operand.vmem [shape: f32[1,96], index: 2, kind: input, shape index: {}]
  %s3 = inlined_call_operand.vmem [shape: f32[32,96], index: 3, kind: input, shape index: {}]
  %s4 = inlined_call_operand.vmem [shape: f32[1,32], index: 4, kind: input, shape index: {}]
  %s5 = inlined_call_operand.vmem [shape: f32[32,16], index: 5, kind: input, shape index: {}]
  %s6 = inlined_call_operand.vmem [shape: f32[2,16], index: 6, kind: input, shape index: {}]
  %s7 = inlined_call_operand.vmem [shape: f32[16,16], index: 7, kind: input, shape index: {}]
  %s8 = inlined_call_operand.vmem [shape: f32[1,16], index: 8, kind: input, shape index: {}]
  %s9 = inlined_call_operand.hbm [shape: f32[2,16], index: 9, kind: output, shape index: {}]
  %s10 = sld [smem:[#allocation0]]
  $region46: #{model_forward.1} parent=0
    _
  %s12 = ssub.s32 1, %s10
  %s13 = scalar_select 0, %s12, %s10
  $region1: #{model_forward.1} parent=0
    #allocation2 [shape = 'u8[1024]{0}', space=vmem, size = 0x400, scoped, tag = 'output window, operand 0, single buffered']
    #allocation3 [shape = 's32[1]{0}', space=sflag, size = 0x4, scoped, tag = 'scoped memory for model_forward.1']
    %14 = vsyncpa [#allocation3], 0
    // Predicated region
    $region2: #{model_forward.1} parent=1 // pred_check
      _
    $region3: #{model_forward.1} parent=1 // pred_check_branch
      %16 = sbr.rel (0) target = $region5
    $region4: #{model_forward.1} parent=1 // pred_region
      _
    $region5: #{model_forward.1} parent=1 // pred_fallthru
      _
    // Predicated region
    $region6: #{model_forward.1} parent=1 // pred_check
      _
    $region7: #{model_forward.1} parent=1 // pred_check_branch
      %18 = sbr.rel (0) target = $region9
    $region8: #{model_forward.1} parent=1 // pred_region
      _
    $region9: #{model_forward.1} parent=1 // pred_fallthru
      _
    // Predicated region
    $region10: #{model_forward.1} parent=1 // pred_check
      _
    $region11: #{model_forward.1} parent=1 // pred_check_branch
      %20 = sbr.rel (0) target = $region13
    $region12: #{model_forward.1} parent=1 // pred_region
      _
    $region13: #{model_forward.1} parent=1 // pred_fallthru
      _
    // Predicated region
    $region14: #{model_forward.1} parent=1 // pred_check
      _
    $region15: #{model_forward.1} parent=1 // pred_check_branch
      %22 = sbr.rel (0) target = $region17
    $region16: #{model_forward.1} parent=1 // pred_region
      _
    $region17: #{model_forward.1} parent=1 // pred_fallthru
      _
    // Predicated region
    $region18: #{model_forward.1} parent=1 // pred_check
      _
    $region19: #{model_forward.1} parent=1 // pred_check_branch
      %24 = sbr.rel (0) target = $region21
    $region20: #{model_forward.1} parent=1 // pred_region
      _
    $region21: #{model_forward.1} parent=1 // pred_fallthru
      _
    // Predicated region
    $region22: #{model_forward.1} parent=1 // pred_check
      _
    $region23: #{model_forward.1} parent=1 // pred_check_branch
      %26 = sbr.rel (0) target = $region25
    $region24: #{model_forward.1} parent=1 // pred_region
      _
    $region25: #{model_forward.1} parent=1 // pred_fallthru
      _
    // Predicated region
    $region26: #{model_forward.1} parent=1 // pred_check
      _
    $region27: #{model_forward.1} parent=1 // pred_check_branch
      %28 = sbr.rel (0) target = $region29
    $region28: #{model_forward.1} parent=1 // pred_region
      _
    $region29: #{model_forward.1} parent=1 // pred_fallthru
      _
    // Predicated region
    $region30: #{model_forward.1} parent=1 // pred_check
      _
    $region31: #{model_forward.1} parent=1 // pred_check_branch
      %30 = sbr.rel (0) target = $region33
    $region32: #{model_forward.1} parent=1 // pred_region
      _
    $region33: #{model_forward.1} parent=1 // pred_fallthru
      _
    // Predicated region
    $region34: #{model_forward.1} parent=1 // pred_check
      _
    $region35: #{model_forward.1} parent=1 // pred_check_branch
      %32 = sbr.rel (0) target = $region37
    $region36: #{model_forward.1} parent=1 // pred_region
      _
    $region37: #{model_forward.1} parent=1 // pred_fallthru
      _
    %v33 = vld [vmem:[%s0] sm:$0xff]
    %v34 = vld [vmem:[%s0 + $0x8] sm:$0xff]
    %v35 = vld [vmem:[%s1] sm:$0xff]
    %v36 = vld [vmem:[%s1 + $0x8] sm:$0xff]
    %v37 = vld [vmem:[%s2] sm:$0x1]
    %v39 = vlaneseq
    %v40 = vshrl.u32 %v39, 7
    %v41 = vsub.s32 0, %v40
    %v42 = vrot.slane %v37, %v41
    %vm44 = vcmask 130048
    %v46 = vsel %vm44, %v33, 0
    %v49 = vsel %vm44, %v34, 0
    %51 = vmatprep.subr.mxu0 0.0
    %52 = vmatpush1.msra.mxu0 %v35
    %53 = vmatprep.subr.mxu0 0.0
    %54 = vmatpush1.msra.mxu0 %v36
    %55 = vmatprep.subr.mxu0 0.0
    %56 = vmatpush1.msra.mxu0 0.0
    %57 = vmatprep.subr.mxu0 0.0
    %58 = vmatpush1.msra.mxu0 0.0
    %59 = vmatprep.subr.mxu0 0.0
    %60 = vmatpush1.msra.mxu0 0.0
    %61 = vmatprep.subr.mxu0 0.0
    %62 = vmatpush1.msra.mxu0 0.0
    %63 = vmatprep.subr.mxu0 0.0
    %64 = vmatpush1.msra.mxu0 0.0
    %65 = vmatprep.subr.mxu0 0.0
    %66 = vmatpush1.msra.mxu0 0.0
    %67 = vmatprep.subr.mxu0 0.0
    %68 = vmatpush1.msra.mxu0 0.0
    %69 = vmatprep.subr.mxu0 0.0
    %70 = vmatpush1.msra.mxu0 0.0
    %71 = vmatprep.subr.mxu0 0.0
    %72 = vmatpush1.msra.mxu0 0.0
    %73 = vmatprep.subr.mxu0 0.0
    %74 = vmatpush1.msra.mxu0 0.0
    %75 = vmatprep.subr.mxu0 0.0
    %76 = vmatpush1.msra.mxu0 0.0
    %77 = vmatprep.subr.mxu0 0.0
    %78 = vmatpush1.msra.mxu0 0.0
    %79 = vmatprep.subr.mxu0 0.0
    %80 = vmatpush1.msra.mxu0 0.0
    %81 = vmatprep.subr.mxu0 0.0
    %82 = vmatpush1.msra.mxu0 0.0
    %83 = vmatprep.subr.mxu0 0.0
    %84 = vmatpush1.msra.mxu0 0.0
    %85 = vmatprep.subr.mxu0 0.0
    %86 = vmatpush1.msra.mxu0 0.0
    %87 = vmatprep.subr.mxu0 0.0
    %88 = vmatpush1.msra.mxu0 0.0
    %89 = vmatprep.subr.mxu0 0.0
    %90 = vmatpush1.msra.mxu0 0.0
    %91 = vmatprep.subr.mxu0 0.0
    %92 = vmatpush1.msra.mxu0 0.0
    %93 = vmatprep.subr.mxu0 0.0
    %94 = vmatpush1.msra.mxu0 0.0
    %95 = vmatprep.subr.mxu0 0.0
    %96 = vmatpush1.msra.mxu0 0.0
    %97 = vmatprep.subr.mxu0 0.0
    %98 = vmatpush1.msra.mxu0 0.0
    %99 = vmatprep.subr.mxu0 0.0
    %100 = vmatpush1.msra.mxu0 0.0
    %101 = vmatprep.subr.mxu0 0.0
    %102 = vmatpush1.msra.mxu0 0.0
    %103 = vmatprep.subr.mxu0 0.0
    %104 = vmatpush1.msra.mxu0 0.0
    %105 = vmatprep.subr.mxu0 0.0
    %106 = vmatpush1.msra.mxu0 0.0
    %107 = vmatprep.subr.mxu0 0.0
    %108 = vmatpush1.msra.mxu0 0.0
    %109 = vmatprep.subr.mxu0 0.0
    %110 = vmatpush1.msra.mxu0 0.0
    %111 = vmatprep.subr.mxu0 0.0
    %112 = vmatpush1.msra.mxu0 0.0
    %113 = vmatprep.subr.mxu0 0.0
    %114 = vmatpush1.msra.mxu0 0.0
    %115 = vmatprep.mubr.f32.mxu0 0.0
    %116 = vmatmul.mubr.f32.gmra.mrb[0].mxu0 %v46
    %v117 = vpop.f32.mrb[0].mxu0
    %v118 = vadd.f32 %v42, %v117
    %v119 = vpop.f32.mrb[0].mxu0
    %120 = vmatprep.mubr.f32.mxu0 0.0
    %121 = vmatmul.mubr.f32.gmra.mrb[0].mxu0 %v49
    %v122 = vpop.f32.mrb[0].mxu0
    %v123 = vadd.f32 %v42, %v122
    %v124 = vpop.f32.mrb[0].mxu0
    %125 = vdwg.mxu0
    %v126 = vld [vmem:[%s3] sm:$0xff]
    %v127 = vld [vmem:[%s3 + $0x8] sm:$0xff]
    %v128 = vld [vmem:[%s3 + $0x10] sm:$0xff]
    %v129 = vld [vmem:[%s3 + $0x18] sm:$0xff]
    %v130 = vld [vmem:[%s4] sm:$0x1]
    %vm131 = vcmask 261120
    %v133 = vsel %vm131, 0.0, 0
    %135 = vmatprep.subr.mxu0 0.0
    %136 = vmatpush1.msra.mxu0 %v126
    %137 = vmatprep.subr.mxu0 0.0
    %138 = vmatpush1.msra.mxu0 %v127
    %139 = vmatprep.subr.mxu0 0.0
    %140 = vmatpush1.msra.mxu0 %v128
    %141 = vmatprep.subr.mxu0 0.0
    %142 = vmatpush1.msra.mxu0 %v129
    %143 = vmatprep.subr.mxu0 0.0
    %144 = vmatpush1.msra.mxu0 0.0
    %145 = vmatprep.subr.mxu0 0.0
    %146 = vmatpush1.msra.mxu0 0.0
    %147 = vmatprep.subr.mxu0 0.0
    %148 = vmatpush1.msra.mxu0 0.0
    %149 = vmatprep.subr.mxu0 0.0
    %150 = vmatpush1.msra.mxu0 0.0
    %151 = vmatprep.subr.mxu0 0.0
    %152 = vmatpush1.msra.mxu0 0.0
    %153 = vmatprep.subr.mxu0 0.0
    %154 = vmatpush1.msra.mxu0 0.0
    %155 = vmatprep.subr.mxu0 0.0
    %156 = vmatpush1.msra.mxu0 0.0
    %157 = vmatprep.subr.mxu0 0.0
    %158 = vmatpush1.msra.mxu0 0.0
    %159 = vmatprep.subr.mxu0 0.0
    %160 = vmatpush1.msra.mxu0 0.0
    %161 = vmatprep.subr.mxu0 0.0
    %162 = vmatpush1.msra.mxu0 0.0
    %163 = vmatprep.subr.mxu0 0.0
    %164 = vmatpush1.msra.mxu0 0.0
    %165 = vmatprep.subr.mxu0 0.0
    %166 = vmatpush1.msra.mxu0 0.0
    %167 = vmatprep.subr.mxu0 0.0
    %168 = vmatpush1.msra.mxu0 0.0
    %169 = vmatprep.subr.mxu0 0.0
    %170 = vmatpush1.msra.mxu0 0.0
    %171 = vmatprep.subr.mxu0 0.0
    %172 = vmatpush1.msra.mxu0 0.0
    %173 = vmatprep.subr.mxu0 0.0
    %174 = vmatpush1.msra.mxu0 0.0
    %175 = vmatprep.subr.mxu0 0.0
    %176 = vmatpush1.msra.mxu0 0.0
    %177 = vmatprep.subr.mxu0 0.0
    %178 = vmatpush1.msra.mxu0 0.0
    %179 = vmatprep.subr.mxu0 0.0
    %180 = vmatpush1.msra.mxu0 0.0
    %181 = vmatprep.subr.mxu0 0.0
    %182 = vmatpush1.msra.mxu0 0.0
    %183 = vmatprep.subr.mxu0 0.0
    %184 = vmatpush1.msra.mxu0 0.0
    %185 = vmatprep.subr.mxu0 0.0
    %186 = vmatpush1.msra.mxu0 0.0
    %187 = vmatprep.subr.mxu0 0.0
    %188 = vmatpush1.msra.mxu0 0.0
    %189 = vmatprep.subr.mxu0 0.0
    %190 = vmatpush1.msra.mxu0 0.0
    %191 = vmatprep.subr.mxu0 0.0
    %192 = vmatpush1.msra.mxu0 0.0
    %193 = vmatprep.subr.mxu0 0.0
    %194 = vmatpush1.msra.mxu0 0.0
    %195 = vmatprep.subr.mxu0 0.0
    %196 = vmatpush1.msra.mxu0 0.0
    %197 = vmatprep.subr.mxu0 0.0
    %198 = vmatpush1.msra.mxu0 0.0
    %199 = vmatprep.mubr.f32.mxu0 0.0
    %200 = vmatmul.mubr.f32.gmra.mrb[0].mxu0 %v133
    %v201 = vpop.f32.mrb[0].mxu0
    %v202 = vadd.f32 0.0, %v201
    %v203 = vpop.f32.mrb[0].mxu0
    %204 = vdwg.mxu0
    %v205 = vadd.f32 %v118, %v202
    %v206 = vxor.u32 %v205, 2147483648
    %v207 = vmul.f32 %v206, 1.442695
    %v208 = vpow.pop %v207
    %v209 = vadd.f32 %v208, 1.0
    %v210 = vrcp.pop %v209
    %v211 = vmul.f32 1.0, %v210
    %v213 = vlaneseq
    %v214 = vshrl.u32 %v213, 7
    %v215 = vsub.s32 0, %v214
    %v216 = vrot.slane %v130, %v215
    %217 = vrot.lane.b32.xlu0 %v216, 64
    %v218 = vpop.permute.xlu0 %217
    %v220 = vadd.f32 %v202, %v218
    %222 = vrot.lane.b32.xlu0 %v220, 64
    %v223 = vpop.permute.xlu0 %222
    %v225 = vmul.f32 %v211, %v223
    %227 = vrot.lane.b32.xlu0 %v225, 64
    %v228 = vpop.permute.xlu0 %227
    %v230 = vadd.f32 %v118, %v228
    %v231 = vtanh.pop %v230
    %v232 = vsub.f32 1.0, %v211
    %234 = vrot.lane.b32.xlu0 %v231, 96
    %v235 = vpop.permute.xlu0 %234
    %v237 = vmul.f32 %v232, %v235
    %v238 = vmul.f32 %v211, 0.0
    %v239 = vadd.f32 %v237, %v238
    %241 = vrot.lane.b32.xlu0 %v239, 96
    %v242 = vpop.permute.xlu0 %241
    %v243 = vsel %vm131, %v242, 0
    %245 = vmatprep.subr.mxu0 0.0
    %246 = vmatpush1.msra.mxu0 %v126
    %247 = vmatprep.subr.mxu0 0.0
    %248 = vmatpush1.msra.mxu0 %v127
    %249 = vmatprep.subr.mxu0 0.0
    %250 = vmatpush1.msra.mxu0 %v128
    %251 = vmatprep.subr.mxu0 0.0
    %252 = vmatpush1.msra.mxu0 %v129
    %253 = vmatprep.subr.mxu0 0.0
    %254 = vmatpush1.msra.mxu0 0.0
    %255 = vmatprep.subr.mxu0 0.0
    %256 = vmatpush1.msra.mxu0 0.0
    %257 = vmatprep.subr.mxu0 0.0
    %258 = vmatpush1.msra.mxu0 0.0
    %259 = vmatprep.subr.mxu0 0.0
    %260 = vmatpush1.msra.mxu0 0.0
    %261 = vmatprep.subr.mxu0 0.0
    %262 = vmatpush1.msra.mxu0 0.0
    %263 = vmatprep.subr.mxu0 0.0
    %264 = vmatpush1.msra.mxu0 0.0
    %265 = vmatprep.subr.mxu0 0.0
    %266 = vmatpush1.msra.mxu0 0.0
    %267 = vmatprep.subr.mxu0 0.0
    %268 = vmatpush1.msra.mxu0 0.0
    %269 = vmatprep.subr.mxu0 0.0
    %270 = vmatpush1.msra.mxu0 0.0
    %271 = vmatprep.subr.mxu0 0.0
    %272 = vmatpush1.msra.mxu0 0.0
    %273 = vmatprep.subr.mxu0 0.0
    %274 = vmatpush1.msra.mxu0 0.0
    %275 = vmatprep.subr.mxu0 0.0
    %276 = vmatpush1.msra.mxu0 0.0
    %277 = vmatprep.subr.mxu0 0.0
    %278 = vmatpush1.msra.mxu0 0.0
    %279 = vmatprep.subr.mxu0 0.0
    %280 = vmatpush1.msra.mxu0 0.0
    %281 = vmatprep.subr.mxu0 0.0
    %282 = vmatpush1.msra.mxu0 0.0
    %283 = vmatprep.subr.mxu0 0.0
    %284 = vmatpush1.msra.mxu0 0.0
    %285 = vmatprep.subr.mxu0 0.0
    %286 = vmatpush1.msra.mxu0 0.0
    %287 = vmatprep.subr.mxu0 0.0
    %288 = vmatpush1.msra.mxu0 0.0
    %289 = vmatprep.subr.mxu0 0.0
    %290 = vmatpush1.msra.mxu0 0.0
    %291 = vmatprep.subr.mxu0 0.0
    %292 = vmatpush1.msra.mxu0 0.0
    %293 = vmatprep.subr.mxu0 0.0
    %294 = vmatpush1.msra.mxu0 0.0
    %295 = vmatprep.subr.mxu0 0.0
    %296 = vmatpush1.msra.mxu0 0.0
    %297 = vmatprep.subr.mxu0 0.0
    %298 = vmatpush1.msra.mxu0 0.0
    %299 = vmatprep.subr.mxu0 0.0
    %300 = vmatpush1.msra.mxu0 0.0
    %301 = vmatprep.subr.mxu0 0.0
    %302 = vmatpush1.msra.mxu0 0.0
    %303 = vmatprep.subr.mxu0 0.0
    %304 = vmatpush1.msra.mxu0 0.0
    %305 = vmatprep.subr.mxu0 0.0
    %306 = vmatpush1.msra.mxu0 0.0
    %307 = vmatprep.subr.mxu0 0.0
    %308 = vmatpush1.msra.mxu0 0.0
    %309 = vmatprep.mubr.f32.mxu0 0.0
    %310 = vmatmul.mubr.f32.gmra.mrb[0].mxu0 %v243
    %v311 = vpop.f32.mrb[0].mxu0
    %v312 = vadd.f32 0.0, %v311
    %v313 = vpop.f32.mrb[0].mxu0
    %314 = vdwg.mxu0
    %v316 = vrot.slane %v312, 6
    %v318 = vadd.f32 %v118, %v316
    %v319 = vxor.u32 %v318, 2147483648
    %v320 = vmul.f32 %v319, 1.442695
    %v321 = vpow.pop %v320
    %v322 = vadd.f32 %v321, 1.0
    %v323 = vrcp.pop %v322
    %v324 = vmul.f32 1.0, %v323
    %v325 = vadd.f32 %v312, %v218
    %v327 = vrot.slane %v325, 6
    %328 = vrot.lane.b32.xlu0 %v327, 64
    %v329 = vpop.permute.xlu0 %328
    %v331 = vmul.f32 %v324, %v329
    %333 = vrot.lane.b32.xlu0 %v331, 64
    %v334 = vpop.permute.xlu0 %333
    %v336 = vadd.f32 %v118, %v334
    %v337 = vtanh.pop %v336
    %v338 = vsub.f32 1.0, %v324
    %340 = vrot.lane.b32.xlu0 %v337, 96
    %v341 = vpop.permute.xlu0 %340
    %v343 = vmul.f32 %v338, %v341
    %v344 = vrot.slane %v239, 6
    %v346 = vmul.f32 %v324, %v344
    %v347 = vadd.f32 %v343, %v346
    %v349 = vrot.slane %v347, 2
    %350 = vrot.lane.b32.xlu0 %v349, 96
    %v351 = vpop.permute.xlu0 %350
    %v352 = vsel %vm131, %v351, 0
    %354 = vmatprep.subr.mxu0 0.0
    %355 = vmatpush1.msra.mxu0 %v126
    %356 = vmatprep.subr.mxu0 0.0
    %357 = vmatpush1.msra.mxu0 %v127
    %358 = vmatprep.subr.mxu0 0.0
    %359 = vmatpush1.msra.mxu0 %v128
    %360 = vmatprep.subr.mxu0 0.0
    %361 = vmatpush1.msra.mxu0 %v129
    %362 = vmatprep.subr.mxu0 0.0
    %363 = vmatpush1.msra.mxu0 0.0
    %364 = vmatprep.subr.mxu0 0.0
    %365 = vmatpush1.msra.mxu0 0.0
    %366 = vmatprep.subr.mxu0 0.0
    %367 = vmatpush1.msra.mxu0 0.0
    %368 = vmatprep.subr.mxu0 0.0
    %369 = vmatpush1.msra.mxu0 0.0
    %370 = vmatprep.subr.mxu0 0.0
    %371 = vmatpush1.msra.mxu0 0.0
    %372 = vmatprep.subr.mxu0 0.0
    %373 = vmatpush1.msra.mxu0 0.0
    %374 = vmatprep.subr.mxu0 0.0
    %375 = vmatpush1.msra.mxu0 0.0
    %376 = vmatprep.subr.mxu0 0.0
    %377 = vmatpush1.msra.mxu0 0.0
    %378 = vmatprep.subr.mxu0 0.0
    %379 = vmatpush1.msra.mxu0 0.0
    %380 = vmatprep.subr.mxu0 0.0
    %381 = vmatpush1.msra.mxu0 0.0
    %382 = vmatprep.subr.mxu0 0.0
    %383 = vmatpush1.msra.mxu0 0.0
    %384 = vmatprep.subr.mxu0 0.0
    %385 = vmatpush1.msra.mxu0 0.0
    %386 = vmatprep.subr.mxu0 0.0
    %387 = vmatpush1.msra.mxu0 0.0
    %388 = vmatprep.subr.mxu0 0.0
    %389 = vmatpush1.msra.mxu0 0.0
    %390 = vmatprep.subr.mxu0 0.0
    %391 = vmatpush1.msra.mxu0 0.0
    %392 = vmatprep.subr.mxu0 0.0
    %393 = vmatpush1.msra.mxu0 0.0
    %394 = vmatprep.subr.mxu0 0.0
    %395 = vmatpush1.msra.mxu0 0.0
    %396 = vmatprep.subr.mxu0 0.0
    %397 = vmatpush1.msra.mxu0 0.0
    %398 = vmatprep.subr.mxu0 0.0
    %399 = vmatpush1.msra.mxu0 0.0
    %400 = vmatprep.subr.mxu0 0.0
    %401 = vmatpush1.msra.mxu0 0.0
    %402 = vmatprep.subr.mxu0 0.0
    %403 = vmatpush1.msra.mxu0 0.0
    %404 = vmatprep.subr.mxu0 0.0
    %405 = vmatpush1.msra.mxu0 0.0
    %406 = vmatprep.subr.mxu0 0.0
    %407 = vmatpush1.msra.mxu0 0.0
    %408 = vmatprep.subr.mxu0 0.0
    %409 = vmatpush1.msra.mxu0 0.0
    %410 = vmatprep.subr.mxu0 0.0
    %411 = vmatpush1.msra.mxu0 0.0
    %412 = vmatprep.subr.mxu0 0.0
    %413 = vmatpush1.msra.mxu0 0.0
    %414 = vmatprep.subr.mxu0 0.0
    %415 = vmatpush1.msra.mxu0 0.0
    %416 = vmatprep.subr.mxu0 0.0
    %417 = vmatpush1.msra.mxu0 0.0
    %418 = vmatprep.mubr.f32.mxu0 0.0
    %419 = vmatmul.mubr.f32.gmra.mrb[0].mxu0 %v352
    %v420 = vpop.f32.mrb[0].mxu0
    %v421 = vadd.f32 0.0, %v420
    %v422 = vpop.f32.mrb[0].mxu0
    %423 = vdwg.mxu0
    %v425 = vrot.slane %v421, 4
    %v427 = vadd.f32 %v118, %v425
    %v428 = vxor.u32 %v427, 2147483648
    %v429 = vmul.f32 %v428, 1.442695
    %v430 = vpow.pop %v429
    %v431 = vadd.f32 %v430, 1.0
    %v432 = vrcp.pop %v431
    %v433 = vmul.f32 1.0, %v432
    %v434 = vadd.f32 %v421, %v218
    %v436 = vrot.slane %v434, 4
    %437 = vrot.lane.b32.xlu0 %v436, 64
    %v438 = vpop.permute.xlu0 %437
    %v440 = vmul.f32 %v433, %v438
    %442 = vrot.lane.b32.xlu0 %v440, 64
    %v443 = vpop.permute.xlu0 %442
    %v445 = vadd.f32 %v118, %v443
    %v446 = vtanh.pop %v445
    %v447 = vsub.f32 1.0, %v433
    %449 = vrot.lane.b32.xlu0 %v446, 96
    %v450 = vpop.permute.xlu0 %449
    %v452 = vmul.f32 %v447, %v450
    %v453 = vrot.slane %v347, 6
    %v455 = vmul.f32 %v433, %v453
    %v456 = vadd.f32 %v452, %v455
    %v458 = vrot.slane %v456, 4
    %459 = vrot.lane.b32.xlu0 %v458, 96
    %v460 = vpop.permute.xlu0 %459
    %v461 = vsel %vm131, %v460, 0
    %463 = vmatprep.subr.mxu0 0.0
    %464 = vmatpush1.msra.mxu0 %v126
    %465 = vmatprep.subr.mxu0 0.0
    %466 = vmatpush1.msra.mxu0 %v127
    %467 = vmatprep.subr.mxu0 0.0
    %468 = vmatpush1.msra.mxu0 %v128
    %469 = vmatprep.subr.mxu0 0.0
    %470 = vmatpush1.msra.mxu0 %v129
    %471 = vmatprep.subr.mxu0 0.0
    %472 = vmatpush1.msra.mxu0 0.0
    %473 = vmatprep.subr.mxu0 0.0
    %474 = vmatpush1.msra.mxu0 0.0
    %475 = vmatprep.subr.mxu0 0.0
    %476 = vmatpush1.msra.mxu0 0.0
    %477 = vmatprep.subr.mxu0 0.0
    %478 = vmatpush1.msra.mxu0 0.0
    %479 = vmatprep.subr.mxu0 0.0
    %480 = vmatpush1.msra.mxu0 0.0
    %481 = vmatprep.subr.mxu0 0.0
    %482 = vmatpush1.msra.mxu0 0.0
    %483 = vmatprep.subr.mxu0 0.0
    %484 = vmatpush1.msra.mxu0 0.0
    %485 = vmatprep.subr.mxu0 0.0
    %486 = vmatpush1.msra.mxu0 0.0
    %487 = vmatprep.subr.mxu0 0.0
    %488 = vmatpush1.msra.mxu0 0.0
    %489 = vmatprep.subr.mxu0 0.0
    %490 = vmatpush1.msra.mxu0 0.0
    %491 = vmatprep.subr.mxu0 0.0
    %492 = vmatpush1.msra.mxu0 0.0
    %493 = vmatprep.subr.mxu0 0.0
    %494 = vmatpush1.msra.mxu0 0.0
    %495 = vmatprep.subr.mxu0 0.0
    %496 = vmatpush1.msra.mxu0 0.0
    %497 = vmatprep.subr.mxu0 0.0
    %498 = vmatpush1.msra.mxu0 0.0
    %499 = vmatprep.subr.mxu0 0.0
    %500 = vmatpush1.msra.mxu0 0.0
    %501 = vmatprep.subr.mxu0 0.0
    %502 = vmatpush1.msra.mxu0 0.0
    %503 = vmatprep.subr.mxu0 0.0
    %504 = vmatpush1.msra.mxu0 0.0
    %505 = vmatprep.subr.mxu0 0.0
    %506 = vmatpush1.msra.mxu0 0.0
    %507 = vmatprep.subr.mxu0 0.0
    %508 = vmatpush1.msra.mxu0 0.0
    %509 = vmatprep.subr.mxu0 0.0
    %510 = vmatpush1.msra.mxu0 0.0
    %511 = vmatprep.subr.mxu0 0.0
    %512 = vmatpush1.msra.mxu0 0.0
    %513 = vmatprep.subr.mxu0 0.0
    %514 = vmatpush1.msra.mxu0 0.0
    %515 = vmatprep.subr.mxu0 0.0
    %516 = vmatpush1.msra.mxu0 0.0
    %517 = vmatprep.subr.mxu0 0.0
    %518 = vmatpush1.msra.mxu0 0.0
    %519 = vmatprep.subr.mxu0 0.0
    %520 = vmatpush1.msra.mxu0 0.0
    %521 = vmatprep.subr.mxu0 0.0
    %522 = vmatpush1.msra.mxu0 0.0
    %523 = vmatprep.subr.mxu0 0.0
    %524 = vmatpush1.msra.mxu0 0.0
    %525 = vmatprep.subr.mxu0 0.0
    %526 = vmatpush1.msra.mxu0 0.0
    %527 = vmatprep.mubr.f32.mxu0 0.0
    %528 = vmatmul.mubr.f32.gmra.mrb[0].mxu0 %v461
    %v529 = vpop.f32.mrb[0].mxu0
    %v530 = vadd.f32 0.0, %v529
    %v531 = vpop.f32.mrb[0].mxu0
    %532 = vdwg.mxu0
    %v534 = vrot.slane %v530, 2
    %v536 = vadd.f32 %v118, %v534
    %v537 = vxor.u32 %v536, 2147483648
    %v538 = vmul.f32 %v537, 1.442695
    %v539 = vpow.pop %v538
    %v540 = vadd.f32 %v539, 1.0
    %v541 = vrcp.pop %v540
    %v542 = vmul.f32 1.0, %v541
    %v543 = vadd.f32 %v530, %v218
    %v545 = vrot.slane %v543, 2
    %546 = vrot.lane.b32.xlu0 %v545, 64
    %v547 = vpop.permute.xlu0 %546
    %v549 = vmul.f32 %v542, %v547
    %551 = vrot.lane.b32.xlu0 %v549, 64
    %v552 = vpop.permute.xlu0 %551
    %v554 = vadd.f32 %v118, %v552
    %v555 = vtanh.pop %v554
    %v556 = vsub.f32 1.0, %v542
    %558 = vrot.lane.b32.xlu0 %v555, 96
    %v559 = vpop.permute.xlu0 %558
    %v561 = vmul.f32 %v556, %v559
    %v562 = vrot.slane %v456, 6
    %v564 = vmul.f32 %v542, %v562
    %v565 = vadd.f32 %v561, %v564
    %v567 = vrot.slane %v565, 6
    %568 = vrot.lane.b32.xlu0 %v567, 96
    %v569 = vpop.permute.xlu0 %568
    %v570 = vsel %vm131, %v569, 0
    %572 = vmatprep.subr.mxu0 0.0
    %573 = vmatpush1.msra.mxu0 %v126
    %574 = vmatprep.subr.mxu0 0.0
    %575 = vmatpush1.msra.mxu0 %v127
    %576 = vmatprep.subr.mxu0 0.0
    %577 = vmatpush1.msra.mxu0 %v128
    %578 = vmatprep.subr.mxu0 0.0
    %579 = vmatpush1.msra.mxu0 %v129
    %580 = vmatprep.subr.mxu0 0.0
    %581 = vmatpush1.msra.mxu0 0.0
    %582 = vmatprep.subr.mxu0 0.0
    %583 = vmatpush1.msra.mxu0 0.0
    %584 = vmatprep.subr.mxu0 0.0
    %585 = vmatpush1.msra.mxu0 0.0
    %586 = vmatprep.subr.mxu0 0.0
    %587 = vmatpush1.msra.mxu0 0.0
    %588 = vmatprep.subr.mxu0 0.0
    %589 = vmatpush1.msra.mxu0 0.0
    %590 = vmatprep.subr.mxu0 0.0
    %591 = vmatpush1.msra.mxu0 0.0
    %592 = vmatprep.subr.mxu0 0.0
    %593 = vmatpush1.msra.mxu0 0.0
    %594 = vmatprep.subr.mxu0 0.0
    %595 = vmatpush1.msra.mxu0 0.0
    %596 = vmatprep.subr.mxu0 0.0
    %597 = vmatpush1.msra.mxu0 0.0
    %598 = vmatprep.subr.mxu0 0.0
    %599 = vmatpush1.msra.mxu0 0.0
    %600 = vmatprep.subr.mxu0 0.0
    %601 = vmatpush1.msra.mxu0 0.0
    %602 = vmatprep.subr.mxu0 0.0
    %603 = vmatpush1.msra.mxu0 0.0
    %604 = vmatprep.subr.mxu0 0.0
    %605 = vmatpush1.msra.mxu0 0.0
    %606 = vmatprep.subr.mxu0 0.0
    %607 = vmatpush1.msra.mxu0 0.0
    %608 = vmatprep.subr.mxu0 0.0
    %609 = vmatpush1.msra.mxu0 0.0
    %610 = vmatprep.subr.mxu0 0.0
    %611 = vmatpush1.msra.mxu0 0.0
    %612 = vmatprep.subr.mxu0 0.0
    %613 = vmatpush1.msra.mxu0 0.0
    %614 = vmatprep.subr.mxu0 0.0
    %615 = vmatpush1.msra.mxu0 0.0
    %616 = vmatprep.subr.mxu0 0.0
    %617 = vmatpush1.msra.mxu0 0.0
    %618 = vmatprep.subr.mxu0 0.0
    %619 = vmatpush1.msra.mxu0 0.0
    %620 = vmatprep.subr.mxu0 0.0
    %621 = vmatpush1.msra.mxu0 0.0
    %622 = vmatprep.subr.mxu0 0.0
    %623 = vmatpush1.msra.mxu0 0.0
    %624 = vmatprep.subr.mxu0 0.0
    %625 = vmatpush1.msra.mxu0 0.0
    %626 = vmatprep.subr.mxu0 0.0
    %627 = vmatpush1.msra.mxu0 0.0
    %628 = vmatprep.subr.mxu0 0.0
    %629 = vmatpush1.msra.mxu0 0.0
    %630 = vmatprep.subr.mxu0 0.0
    %631 = vmatpush1.msra.mxu0 0.0
    %632 = vmatprep.subr.mxu0 0.0
    %633 = vmatpush1.msra.mxu0 0.0
    %634 = vmatprep.subr.mxu0 0.0
    %635 = vmatpush1.msra.mxu0 0.0
    %636 = vmatprep.mubr.f32.mxu0 0.0
    %637 = vmatmul.mubr.f32.gmra.mrb[0].mxu0 %v570
    %v638 = vpop.f32.mrb[0].mxu0
    %v639 = vadd.f32 0.0, %v638
    %v640 = vpop.f32.mrb[0].mxu0
    %641 = vdwg.mxu0
    %v642 = vadd.f32 %v123, %v639
    %v643 = vxor.u32 %v642, 2147483648
    %v644 = vmul.f32 %v643, 1.442695
    %v645 = vpow.pop %v644
    %v646 = vadd.f32 %v645, 1.0
    %v647 = vrcp.pop %v646
    %v648 = vmul.f32 1.0, %v647
    %v649 = vadd.f32 %v639, %v218
    %651 = vrot.lane.b32.xlu0 %v649, 64
    %v652 = vpop.permute.xlu0 %651
    %v654 = vmul.f32 %v648, %v652
    %656 = vrot.lane.b32.xlu0 %v654, 64
    %v657 = vpop.permute.xlu0 %656
    %v659 = vadd.f32 %v123, %v657
    %v660 = vtanh.pop %v659
    %v661 = vsub.f32 1.0, %v648
    %663 = vrot.lane.b32.xlu0 %v660, 96
    %v664 = vpop.permute.xlu0 %663
    %v666 = vmul.f32 %v661, %v664
    %v668 = vmul.f32 %v648, %v567
    %v669 = vadd.f32 %v666, %v668
    %671 = vrot.lane.b32.xlu0 %v669, 96
    %v672 = vpop.permute.xlu0 %671
    %v673 = vsel %vm131, %v672, 0
    %675 = vmatprep.subr.mxu0 0.0
    %676 = vmatpush1.msra.mxu0 %v126
    %677 = vmatprep.subr.mxu0 0.0
    %678 = vmatpush1.msra.mxu0 %v127
    %679 = vmatprep.subr.mxu0 0.0
    %680 = vmatpush1.msra.mxu0 %v128
    %681 = vmatprep.subr.mxu0 0.0
    %682 = vmatpush1.msra.mxu0 %v129
    %683 = vmatprep.subr.mxu0 0.0
    %684 = vmatpush1.msra.mxu0 0.0
    %685 = vmatprep.subr.mxu0 0.0
    %686 = vmatpush1.msra.mxu0 0.0
    %687 = vmatprep.subr.mxu0 0.0
    %688 = vmatpush1.msra.mxu0 0.0
    %689 = vmatprep.subr.mxu0 0.0
    %690 = vmatpush1.msra.mxu0 0.0
    %691 = vmatprep.subr.mxu0 0.0
    %692 = vmatpush1.msra.mxu0 0.0
    %693 = vmatprep.subr.mxu0 0.0
    %694 = vmatpush1.msra.mxu0 0.0
    %695 = vmatprep.subr.mxu0 0.0
    %696 = vmatpush1.msra.mxu0 0.0
    %697 = vmatprep.subr.mxu0 0.0
    %698 = vmatpush1.msra.mxu0 0.0
    %699 = vmatprep.subr.mxu0 0.0
    %700 = vmatpush1.msra.mxu0 0.0
    %701 = vmatprep.subr.mxu0 0.0
    %702 = vmatpush1.msra.mxu0 0.0
    %703 = vmatprep.subr.mxu0 0.0
    %704 = vmatpush1.msra.mxu0 0.0
    %705 = vmatprep.subr.mxu0 0.0
    %706 = vmatpush1.msra.mxu0 0.0
    %707 = vmatprep.subr.mxu0 0.0
    %708 = vmatpush1.msra.mxu0 0.0
    %709 = vmatprep.subr.mxu0 0.0
    %710 = vmatpush1.msra.mxu0 0.0
    %711 = vmatprep.subr.mxu0 0.0
    %712 = vmatpush1.msra.mxu0 0.0
    %713 = vmatprep.subr.mxu0 0.0
    %714 = vmatpush1.msra.mxu0 0.0
    %715 = vmatprep.subr.mxu0 0.0
    %716 = vmatpush1.msra.mxu0 0.0
    %717 = vmatprep.subr.mxu0 0.0
    %718 = vmatpush1.msra.mxu0 0.0
    %719 = vmatprep.subr.mxu0 0.0
    %720 = vmatpush1.msra.mxu0 0.0
    %721 = vmatprep.subr.mxu0 0.0
    %722 = vmatpush1.msra.mxu0 0.0
    %723 = vmatprep.subr.mxu0 0.0
    %724 = vmatpush1.msra.mxu0 0.0
    %725 = vmatprep.subr.mxu0 0.0
    %726 = vmatpush1.msra.mxu0 0.0
    %727 = vmatprep.subr.mxu0 0.0
    %728 = vmatpush1.msra.mxu0 0.0
    %729 = vmatprep.subr.mxu0 0.0
    %730 = vmatpush1.msra.mxu0 0.0
    %731 = vmatprep.subr.mxu0 0.0
    %732 = vmatpush1.msra.mxu0 0.0
    %733 = vmatprep.subr.mxu0 0.0
    %734 = vmatpush1.msra.mxu0 0.0
    %735 = vmatprep.subr.mxu0 0.0
    %736 = vmatpush1.msra.mxu0 0.0
    %737 = vmatprep.subr.mxu0 0.0
    %738 = vmatpush1.msra.mxu0 0.0
    %739 = vmatprep.mubr.f32.mxu0 0.0
    %740 = vmatmul.mubr.f32.gmra.mrb[0].mxu0 %v673
    %v741 = vpop.f32.mrb[0].mxu0
    %v742 = vadd.f32 0.0, %v741
    %v743 = vpop.f32.mrb[0].mxu0
    %744 = vdwg.mxu0
    %v746 = vrot.slane %v742, 6
    %v748 = vadd.f32 %v123, %v746
    %v749 = vxor.u32 %v748, 2147483648
    %v750 = vmul.f32 %v749, 1.442695
    %v751 = vpow.pop %v750
    %v752 = vadd.f32 %v751, 1.0
    %v753 = vrcp.pop %v752
    %v754 = vmul.f32 1.0, %v753
    %v755 = vadd.f32 %v742, %v218
    %v757 = vrot.slane %v755, 6
    %758 = vrot.lane.b32.xlu0 %v757, 64
    %v759 = vpop.permute.xlu0 %758
    %v761 = vmul.f32 %v754, %v759
    %763 = vrot.lane.b32.xlu0 %v761, 64
    %v764 = vpop.permute.xlu0 %763
    %v766 = vadd.f32 %v123, %v764
    %v767 = vtanh.pop %v766
    %v768 = vsub.f32 1.0, %v754
    %770 = vrot.lane.b32.xlu0 %v767, 96
    %v771 = vpop.permute.xlu0 %770
    %v773 = vmul.f32 %v768, %v771
    %v774 = vrot.slane %v669, 6
    %v776 = vmul.f32 %v754, %v774
    %v777 = vadd.f32 %v773, %v776
    %v779 = vrot.slane %v777, 2
    %780 = vrot.lane.b32.xlu0 %v779, 96
    %v781 = vpop.permute.xlu0 %780
    %v782 = vsel %vm131, %v781, 0
    %784 = vmatprep.subr.mxu0 0.0
    %785 = vmatpush1.msra.mxu0 %v126
    %786 = vmatprep.subr.mxu0 0.0
    %787 = vmatpush1.msra.mxu0 %v127
    %788 = vmatprep.subr.mxu0 0.0
    %789 = vmatpush1.msra.mxu0 %v128
    %790 = vmatprep.subr.mxu0 0.0
    %791 = vmatpush1.msra.mxu0 %v129
    %792 = vmatprep.subr.mxu0 0.0
    %793 = vmatpush1.msra.mxu0 0.0
    %794 = vmatprep.subr.mxu0 0.0
    %795 = vmatpush1.msra.mxu0 0.0
    %796 = vmatprep.subr.mxu0 0.0
    %797 = vmatpush1.msra.mxu0 0.0
    %798 = vmatprep.subr.mxu0 0.0
    %799 = vmatpush1.msra.mxu0 0.0
    %800 = vmatprep.subr.mxu0 0.0
    %801 = vmatpush1.msra.mxu0 0.0
    %802 = vmatprep.subr.mxu0 0.0
    %803 = vmatpush1.msra.mxu0 0.0
    %804 = vmatprep.subr.mxu0 0.0
    %805 = vmatpush1.msra.mxu0 0.0
    %806 = vmatprep.subr.mxu0 0.0
    %807 = vmatpush1.msra.mxu0 0.0
    %808 = vmatprep.subr.mxu0 0.0
    %809 = vmatpush1.msra.mxu0 0.0
    %810 = vmatprep.subr.mxu0 0.0
    %811 = vmatpush1.msra.mxu0 0.0
    %812 = vmatprep.subr.mxu0 0.0
    %813 = vmatpush1.msra.mxu0 0.0
    %814 = vmatprep.subr.mxu0 0.0
    %815 = vmatpush1.msra.mxu0 0.0
    %816 = vmatprep.subr.mxu0 0.0
    %817 = vmatpush1.msra.mxu0 0.0
    %818 = vmatprep.subr.mxu0 0.0
    %819 = vmatpush1.msra.mxu0 0.0
    %820 = vmatprep.subr.mxu0 0.0
    %821 = vmatpush1.msra.mxu0 0.0
    %822 = vmatprep.subr.mxu0 0.0
    %823 = vmatpush1.msra.mxu0 0.0
    %824 = vmatprep.subr.mxu0 0.0
    %825 = vmatpush1.msra.mxu0 0.0
    %826 = vmatprep.subr.mxu0 0.0
    %827 = vmatpush1.msra.mxu0 0.0
    %828 = vmatprep.subr.mxu0 0.0
    %829 = vmatpush1.msra.mxu0 0.0
    %830 = vmatprep.subr.mxu0 0.0
    %831 = vmatpush1.msra.mxu0 0.0
    %832 = vmatprep.subr.mxu0 0.0
    %833 = vmatpush1.msra.mxu0 0.0
    %834 = vmatprep.subr.mxu0 0.0
    %835 = vmatpush1.msra.mxu0 0.0
    %836 = vmatprep.subr.mxu0 0.0
    %837 = vmatpush1.msra.mxu0 0.0
    %838 = vmatprep.subr.mxu0 0.0
    %839 = vmatpush1.msra.mxu0 0.0
    %840 = vmatprep.subr.mxu0 0.0
    %841 = vmatpush1.msra.mxu0 0.0
    %842 = vmatprep.subr.mxu0 0.0
    %843 = vmatpush1.msra.mxu0 0.0
    %844 = vmatprep.subr.mxu0 0.0
    %845 = vmatpush1.msra.mxu0 0.0
    %846 = vmatprep.subr.mxu0 0.0
    %847 = vmatpush1.msra.mxu0 0.0
    %848 = vmatprep.mubr.f32.mxu0 0.0
    %849 = vmatmul.mubr.f32.gmra.mrb[0].mxu0 %v782
    %v850 = vpop.f32.mrb[0].mxu0
    %v851 = vadd.f32 0.0, %v850
    %v852 = vpop.f32.mrb[0].mxu0
    %853 = vdwg.mxu0
    %v855 = vrot.slane %v851, 4
    %v857 = vadd.f32 %v123, %v855
    %v858 = vxor.u32 %v857, 2147483648
    %v859 = vmul.f32 %v858, 1.442695
    %v860 = vpow.pop %v859
    %v861 = vadd.f32 %v860, 1.0
    %v862 = vrcp.pop %v861
    %v863 = vmul.f32 1.0, %v862
    %v864 = vadd.f32 %v851, %v218
    %v866 = vrot.slane %v864, 4
    %867 = vrot.lane.b32.xlu0 %v866, 64
    %v868 = vpop.permute.xlu0 %867
    %v870 = vmul.f32 %v863, %v868
    %872 = vrot.lane.b32.xlu0 %v870, 64
    %v873 = vpop.permute.xlu0 %872
    %v875 = vadd.f32 %v123, %v873
    %v876 = vtanh.pop %v875
    %v877 = vsub.f32 1.0, %v863
    %879 = vrot.lane.b32.xlu0 %v876, 96
    %v880 = vpop.permute.xlu0 %879
    %v882 = vmul.f32 %v877, %v880
    %v883 = vrot.slane %v777, 6
    %v885 = vmul.f32 %v863, %v883
    %v886 = vadd.f32 %v882, %v885
    %v888 = vrot.slane %v886, 4
    %889 = vrot.lane.b32.xlu0 %v888, 96
    %v890 = vpop.permute.xlu0 %889
    %v891 = vsel %vm131, %v890, 0
    %893 = vmatprep.subr.mxu0 0.0
    %894 = vmatpush1.msra.mxu0 %v126
    %895 = vmatprep.subr.mxu0 0.0
    %896 = vmatpush1.msra.mxu0 %v127
    %897 = vmatprep.subr.mxu0 0.0
    %898 = vmatpush1.msra.mxu0 %v128
    %899 = vmatprep.subr.mxu0 0.0
    %900 = vmatpush1.msra.mxu0 %v129
    %901 = vmatprep.subr.mxu0 0.0
    %902 = vmatpush1.msra.mxu0 0.0
    %903 = vmatprep.subr.mxu0 0.0
    %904 = vmatpush1.msra.mxu0 0.0
    %905 = vmatprep.subr.mxu0 0.0
    %906 = vmatpush1.msra.mxu0 0.0
    %907 = vmatprep.subr.mxu0 0.0
    %908 = vmatpush1.msra.mxu0 0.0
    %909 = vmatprep.subr.mxu0 0.0
    %910 = vmatpush1.msra.mxu0 0.0
    %911 = vmatprep.subr.mxu0 0.0
    %912 = vmatpush1.msra.mxu0 0.0
    %913 = vmatprep.subr.mxu0 0.0
    %914 = vmatpush1.msra.mxu0 0.0
    %915 = vmatprep.subr.mxu0 0.0
    %916 = vmatpush1.msra.mxu0 0.0
    %917 = vmatprep.subr.mxu0 0.0
    %918 = vmatpush1.msra.mxu0 0.0
    %919 = vmatprep.subr.mxu0 0.0
    %920 = vmatpush1.msra.mxu0 0.0
    %921 = vmatprep.subr.mxu0 0.0
    %922 = vmatpush1.msra.mxu0 0.0
    %923 = vmatprep.subr.mxu0 0.0
    %924 = vmatpush1.msra.mxu0 0.0
    %925 = vmatprep.subr.mxu0 0.0
    %926 = vmatpush1.msra.mxu0 0.0
    %927 = vmatprep.subr.mxu0 0.0
    %928 = vmatpush1.msra.mxu0 0.0
    %929 = vmatprep.subr.mxu0 0.0
    %930 = vmatpush1.msra.mxu0 0.0
    %931 = vmatprep.subr.mxu0 0.0
    %932 = vmatpush1.msra.mxu0 0.0
    %933 = vmatprep.subr.mxu0 0.0
    %934 = vmatpush1.msra.mxu0 0.0
    %935 = vmatprep.subr.mxu0 0.0
    %936 = vmatpush1.msra.mxu0 0.0
    %937 = vmatprep.subr.mxu0 0.0
    %938 = vmatpush1.msra.mxu0 0.0
    %939 = vmatprep.subr.mxu0 0.0
    %940 = vmatpush1.msra.mxu0 0.0
    %941 = vmatprep.subr.mxu0 0.0
    %942 = vmatpush1.msra.mxu0 0.0
    %943 = vmatprep.subr.mxu0 0.0
    %944 = vmatpush1.msra.mxu0 0.0
    %945 = vmatprep.subr.mxu0 0.0
    %946 = vmatpush1.msra.mxu0 0.0
    %947 = vmatprep.subr.mxu0 0.0
    %948 = vmatpush1.msra.mxu0 0.0
    %949 = vmatprep.subr.mxu0 0.0
    %950 = vmatpush1.msra.mxu0 0.0
    %951 = vmatprep.subr.mxu0 0.0
    %952 = vmatpush1.msra.mxu0 0.0
    %953 = vmatprep.subr.mxu0 0.0
    %954 = vmatpush1.msra.mxu0 0.0
    %955 = vmatprep.subr.mxu0 0.0
    %956 = vmatpush1.msra.mxu0 0.0
    %957 = vmatprep.mubr.f32.mxu0 0.0
    %958 = vmatmul.mubr.f32.gmra.mrb[0].mxu0 %v891
    %v959 = vpop.f32.mrb[0].mxu0
    %v960 = vadd.f32 0.0, %v959
    %v961 = vpop.f32.mrb[0].mxu0
    %962 = vdwg.mxu0
    %v964 = vrot.slane %v960, 2
    %v966 = vadd.f32 %v123, %v964
    %v967 = vxor.u32 %v966, 2147483648
    %v968 = vmul.f32 %v967, 1.442695
    %v969 = vpow.pop %v968
    %v970 = vadd.f32 %v969, 1.0
    %v971 = vrcp.pop %v970
    %v972 = vmul.f32 1.0, %v971
    %v973 = vadd.f32 %v960, %v218
    %v975 = vrot.slane %v973, 2
    %976 = vrot.lane.b32.xlu0 %v975, 64
    %v977 = vpop.permute.xlu0 %976
    %v979 = vmul.f32 %v972, %v977
    %981 = vrot.lane.b32.xlu0 %v979, 64
    %v982 = vpop.permute.xlu0 %981
    %v984 = vadd.f32 %v123, %v982
    %v985 = vtanh.pop %v984
    %v986 = vsub.f32 1.0, %v972
    %988 = vrot.lane.b32.xlu0 %v985, 96
    %v989 = vpop.permute.xlu0 %988
    %v991 = vmul.f32 %v986, %v989
    %v992 = vrot.slane %v886, 6
    %v994 = vmul.f32 %v972, %v992
    %v995 = vadd.f32 %v991, %v994
    %v996 = vld [vmem:[%s5] sm:$0xff]
    %v997 = vld [vmem:[%s5 + $0x8] sm:$0xff]
    %v998 = vld [vmem:[%s5 + $0x10] sm:$0xff]
    %v999 = vld [vmem:[%s5 + $0x18] sm:$0xff]
    %v1001 = vrot.slane %v995, 6
    %1002 = vrot.lane.b32.xlu0 %v1001, 96
    %v1003 = vpop.permute.xlu0 %1002
    %v1004 = vsel %vm131, %v1003, 0
    %1006 = vmatprep.subr.mxu0 0.0
    %1007 = vmatpush1.msra.mxu0 %v996
    %1008 = vmatprep.subr.mxu0 0.0
    %1009 = vmatpush1.msra.mxu0 %v997
    %1010 = vmatprep.subr.mxu0 0.0
    %1011 = vmatpush1.msra.mxu0 %v998
    %1012 = vmatprep.subr.mxu0 0.0
    %1013 = vmatpush1.msra.mxu0 %v999
    %1014 = vmatprep.subr.mxu0 0.0
    %1015 = vmatpush1.msra.mxu0 0.0
    %1016 = vmatprep.subr.mxu0 0.0
    %1017 = vmatpush1.msra.mxu0 0.0
    %1018 = vmatprep.subr.mxu0 0.0
    %1019 = vmatpush1.msra.mxu0 0.0
    %1020 = vmatprep.subr.mxu0 0.0
    %1021 = vmatpush1.msra.mxu0 0.0
    %1022 = vmatprep.subr.mxu0 0.0
    %1023 = vmatpush1.msra.mxu0 0.0
    %1024 = vmatprep.subr.mxu0 0.0
    %1025 = vmatpush1.msra.mxu0 0.0
    %1026 = vmatprep.subr.mxu0 0.0
    %1027 = vmatpush1.msra.mxu0 0.0
    %1028 = vmatprep.subr.mxu0 0.0
    %1029 = vmatpush1.msra.mxu0 0.0
    %1030 = vmatprep.subr.mxu0 0.0
    %1031 = vmatpush1.msra.mxu0 0.0
    %1032 = vmatprep.subr.mxu0 0.0
    %1033 = vmatpush1.msra.mxu0 0.0
    %1034 = vmatprep.subr.mxu0 0.0
    %1035 = vmatpush1.msra.mxu0 0.0
    %1036 = vmatprep.subr.mxu0 0.0
    %1037 = vmatpush1.msra.mxu0 0.0
    %1038 = vmatprep.subr.mxu0 0.0
    %1039 = vmatpush1.msra.mxu0 0.0
    %1040 = vmatprep.subr.mxu0 0.0
    %1041 = vmatpush1.msra.mxu0 0.0
    %1042 = vmatprep.subr.mxu0 0.0
    %1043 = vmatpush1.msra.mxu0 0.0
    %1044 = vmatprep.subr.mxu0 0.0
    %1045 = vmatpush1.msra.mxu0 0.0
    %1046 = vmatprep.subr.mxu0 0.0
    %1047 = vmatpush1.msra.mxu0 0.0
    %1048 = vmatprep.subr.mxu0 0.0
    %1049 = vmatpush1.msra.mxu0 0.0
    %1050 = vmatprep.subr.mxu0 0.0
    %1051 = vmatpush1.msra.mxu0 0.0
    %1052 = vmatprep.subr.mxu0 0.0
    %1053 = vmatpush1.msra.mxu0 0.0
    %1054 = vmatprep.subr.mxu0 0.0
    %1055 = vmatpush1.msra.mxu0 0.0
    %1056 = vmatprep.subr.mxu0 0.0
    %1057 = vmatpush1.msra.mxu0 0.0
    %1058 = vmatprep.subr.mxu0 0.0
    %1059 = vmatpush1.msra.mxu0 0.0
    %1060 = vmatprep.subr.mxu0 0.0
    %1061 = vmatpush1.msra.mxu0 0.0
    %1062 = vmatprep.subr.mxu0 0.0
    %1063 = vmatpush1.msra.mxu0 0.0
    %1064 = vmatprep.subr.mxu0 0.0
    %1065 = vmatpush1.msra.mxu0 0.0
    %1066 = vmatprep.subr.mxu0 0.0
    %1067 = vmatpush1.msra.mxu0 0.0
    %1068 = vmatprep.subr.mxu0 0.0
    %1069 = vmatpush1.msra.mxu0 0.0
    %1070 = vmatprep.mubr.f32.mxu0 0.0
    %1071 = vmatmul.mubr.f32.gmra.mrb[0].mxu0 %v1004
    %v1072 = vpop.f32.mrb[0].mxu0
    %v1073 = vadd.f32 0.0, %v1072
    %v1074 = vpop.f32.mrb[0].mxu0
    %1075 = vdwg.mxu0
    %v1076 = vld [vmem:[%s6] sm:$0x3]
    %v1078 = vsel %vm44, %v1076, 0
    %1080 = vmatprep.subr.mxu0 0.0
    %1081 = vmatpush1.msra.mxu0 %v33
    %1082 = vmatprep.subr.mxu0 0.0
    %1083 = vmatpush1.msra.mxu0 %v34
    %1084 = vmatprep.subr.mxu0 0.0
    %1085 = vmatpush1.msra.mxu0 0.0
    %1086 = vmatprep.subr.mxu0 0.0
    %1087 = vmatpush1.msra.mxu0 0.0
    %1088 = vmatprep.subr.mxu0 0.0
    %1089 = vmatpush1.msra.mxu0 0.0
    %1090 = vmatprep.subr.mxu0 0.0
    %1091 = vmatpush1.msra.mxu0 0.0
    %1092 = vmatprep.subr.mxu0 0.0
    %1093 = vmatpush1.msra.mxu0 0.0
    %1094 = vmatprep.subr.mxu0 0.0
    %1095 = vmatpush1.msra.mxu0 0.0
    %1096 = vmatprep.subr.mxu0 0.0
    %1097 = vmatpush1.msra.mxu0 0.0
    %1098 = vmatprep.subr.mxu0 0.0
    %1099 = vmatpush1.msra.mxu0 0.0
    %1100 = vmatprep.subr.mxu0 0.0
    %1101 = vmatpush1.msra.mxu0 0.0
    %1102 = vmatprep.subr.mxu0 0.0
    %1103 = vmatpush1.msra.mxu0 0.0
    %1104 = vmatprep.subr.mxu0 0.0
    %1105 = vmatpush1.msra.mxu0 0.0
    %1106 = vmatprep.subr.mxu0 0.0
    %1107 = vmatpush1.msra.mxu0 0.0
    %1108 = vmatprep.subr.mxu0 0.0
    %1109 = vmatpush1.msra.mxu0 0.0
    %1110 = vmatprep.subr.mxu0 0.0
    %1111 = vmatpush1.msra.mxu0 0.0
    %1112 = vmatprep.subr.mxu0 0.0
    %1113 = vmatpush1.msra.mxu0 0.0
    %1114 = vmatprep.subr.mxu0 0.0
    %1115 = vmatpush1.msra.mxu0 0.0
    %1116 = vmatprep.subr.mxu0 0.0
    %1117 = vmatpush1.msra.mxu0 0.0
    %1118 = vmatprep.subr.mxu0 0.0
    %1119 = vmatpush1.msra.mxu0 0.0
    %1120 = vmatprep.subr.mxu0 0.0
    %1121 = vmatpush1.msra.mxu0 0.0
    %1122 = vmatprep.subr.mxu0 0.0
    %1123 = vmatpush1.msra.mxu0 0.0
    %1124 = vmatprep.subr.mxu0 0.0
    %1125 = vmatpush1.msra.mxu0 0.0
    %1126 = vmatprep.subr.mxu0 0.0
    %1127 = vmatpush1.msra.mxu0 0.0
    %1128 = vmatprep.subr.mxu0 0.0
    %1129 = vmatpush1.msra.mxu0 0.0
    %1130 = vmatprep.subr.mxu0 0.0
    %1131 = vmatpush1.msra.mxu0 0.0
    %1132 = vmatprep.subr.mxu0 0.0
    %1133 = vmatpush1.msra.mxu0 0.0
    %1134 = vmatprep.subr.mxu0 0.0
    %1135 = vmatpush1.msra.mxu0 0.0
    %1136 = vmatprep.subr.mxu0 0.0
    %1137 = vmatpush1.msra.mxu0 0.0
    %1138 = vmatprep.subr.mxu0 0.0
    %1139 = vmatpush1.msra.mxu0 0.0
    %1140 = vmatprep.subr.mxu0 0.0
    %1141 = vmatpush1.msra.mxu0 0.0
    %1142 = vmatprep.subr.mxu0 0.0
    %1143 = vmatpush1.msra.mxu0 0.0
    %1144 = vmatprep.mubr.f32.mxu0 0.0
    %1145 = vmatmul.mubr.f32.gmra.mrb[0].mxu0 %v1078
    %v1146 = vpop.f32.mrb[0].mxu0
    %v1147 = vadd.f32 0.0, %v1146
    %v1148 = vpop.f32.mrb[0].mxu0
    %1149 = vdwg.mxu0
    %v1150 = vld [vmem:[%s7] sm:$0xff]
    %v1151 = vld [vmem:[%s7 + $0x8] sm:$0xff]
    %v1153 = vsel %vm44, %v1147, 0
    %1155 = vmatprep.subr.mxu0 0.0
    %1156 = vmatpush1.msra.mxu0 %v1150
    %1157 = vmatprep.subr.mxu0 0.0
    %1158 = vmatpush1.msra.mxu0 %v1151
    %1159 = vmatprep.subr.mxu0 0.0
    %1160 = vmatpush1.msra.mxu0 0.0
    %1161 = vmatprep.subr.mxu0 0.0
    %1162 = vmatpush1.msra.mxu0 0.0
    %1163 = vmatprep.subr.mxu0 0.0
    %1164 = vmatpush1.msra.mxu0 0.0
    %1165 = vmatprep.subr.mxu0 0.0
    %1166 = vmatpush1.msra.mxu0 0.0
    %1167 = vmatprep.subr.mxu0 0.0
    %1168 = vmatpush1.msra.mxu0 0.0
    %1169 = vmatprep.subr.mxu0 0.0
    %1170 = vmatpush1.msra.mxu0 0.0
    %1171 = vmatprep.subr.mxu0 0.0
    %1172 = vmatpush1.msra.mxu0 0.0
    %1173 = vmatprep.subr.mxu0 0.0
    %1174 = vmatpush1.msra.mxu0 0.0
    %1175 = vmatprep.subr.mxu0 0.0
    %1176 = vmatpush1.msra.mxu0 0.0
    %1177 = vmatprep.subr.mxu0 0.0
    %1178 = vmatpush1.msra.mxu0 0.0
    %1179 = vmatprep.subr.mxu0 0.0
    %1180 = vmatpush1.msra.mxu0 0.0
    %1181 = vmatprep.subr.mxu0 0.0
    %1182 = vmatpush1.msra.mxu0 0.0
    %1183 = vmatprep.subr.mxu0 0.0
    %1184 = vmatpush1.msra.mxu0 0.0
    %1185 = vmatprep.subr.mxu0 0.0
    %1186 = vmatpush1.msra.mxu0 0.0
    %1187 = vmatprep.subr.mxu0 0.0
    %1188 = vmatpush1.msra.mxu0 0.0
    %1189 = vmatprep.subr.mxu0 0.0
    %1190 = vmatpush1.msra.mxu0 0.0
    %1191 = vmatprep.subr.mxu0 0.0
    %1192 = vmatpush1.msra.mxu0 0.0
    %1193 = vmatprep.subr.mxu0 0.0
    %1194 = vmatpush1.msra.mxu0 0.0
    %1195 = vmatprep.subr.mxu0 0.0
    %1196 = vmatpush1.msra.mxu0 0.0
    %1197 = vmatprep.subr.mxu0 0.0
    %1198 = vmatpush1.msra.mxu0 0.0
    %1199 = vmatprep.subr.mxu0 0.0
    %1200 = vmatpush1.msra.mxu0 0.0
    %1201 = vmatprep.subr.mxu0 0.0
    %1202 = vmatpush1.msra.mxu0 0.0
    %1203 = vmatprep.subr.mxu0 0.0
    %1204 = vmatpush1.msra.mxu0 0.0
    %1205 = vmatprep.subr.mxu0 0.0
    %1206 = vmatpush1.msra.mxu0 0.0
    %1207 = vmatprep.subr.mxu0 0.0
    %1208 = vmatpush1.msra.mxu0 0.0
    %1209 = vmatprep.subr.mxu0 0.0
    %1210 = vmatpush1.msra.mxu0 0.0
    %1211 = vmatprep.subr.mxu0 0.0
    %1212 = vmatpush1.msra.mxu0 0.0
    %1213 = vmatprep.subr.mxu0 0.0
    %1214 = vmatpush1.msra.mxu0 0.0
    %1215 = vmatprep.subr.mxu0 0.0
    %1216 = vmatpush1.msra.mxu0 0.0
    %1217 = vmatprep.subr.mxu0 0.0
    %1218 = vmatpush1.msra.mxu0 0.0
    %1219 = vmatprep.mubr.f32.mxu0 0.0
    %1220 = vmatmul.mubr.f32.gmra.mrb[0].mxu0 %v1153
    %v1221 = vpop.f32.mrb[0].mxu0
    %v1222 = vadd.f32 0.0, %v1221
    %v1223 = vpop.f32.mrb[0].mxu0
    %1224 = vdwg.mxu0
    %v1225 = vmul.f32 %v1073, 0.5
    %v1226 = vadd.f32 %v1225, %v1222
    %v1227 = vld [vmem:[%s8] sm:$0x1]
    %v1229 = vlaneseq
    %v1230 = vshrl.u32 %v1229, 7
    %v1231 = vsub.s32 0, %v1230
    %v1232 = vrot.slane %v1227, %v1231
    %v1234 = vadd.f32 %v1226, %v1232
    %v1235 = vxor.u32 %v1234, 2147483648
    %v1236 = vmul.f32 %v1235, 1.442695
    %v1237 = vpow.pop %v1236
    %v1238 = vadd.f32 %v1237, 1.0
    %v1239 = vrcp.pop %v1238
    %v1240 = vmul.f32 1.0, %v1239
    %vm1241 = vcmask 123904
    %1242 = vst.msk [vmem:[#allocation2] sm:$0x3] %vm1241, %v1240
    // Predicated region
    $region38: #{model_forward.1} parent=1 // pred_check
      _
    $region39: #{model_forward.1} parent=1 // pred_check_branch
      %1244 = sbr.rel (0) target = $region41
    $region40: #{model_forward.1} parent=1 // pred_region
      %s1246 = ssub.s32 32, 32
      %1247 = vsyncadd [#allocation3], %s1246
      %s1249 = sshll.u32 [#allocation2], 4
      %s1250 = int_to_ptr.vmem [resolvable:$true] %s1249
      %1252 = dma.vmem_to_hbm [thread:$0]  %s1250, 32, %s9, [#allocation3]
    $region41: #{model_forward.1} parent=1 // pred_fallthru
      _
    // Predicated region
    $region42: #{model_forward.1} parent=1 // pred_check
      _
    $region43: #{model_forward.1} parent=1 // pred_check_branch
      %1254 = sbr.rel (0) target = $region45
    $region44: #{model_forward.1} parent=1 // pred_region
      %1255 = dma.done [#allocation3], 32
    $region45: #{model_forward.1} parent=1 // pred_fallthru
      _
    %1256 = vsyncpa [#allocation3], 1

</llo_original>
